<compile_context>
chip_gen: v5e
topology: v5e:2x2
jax: 0.10.0
libtpu: 0.0.40
codegen_flags: <defaults>
</compile_context>

<pallas_src>
import functools

import jax
import jax.numpy as jnp
from jax.experimental import pallas as pl
from jax.experimental.pallas import tpu as pltpu


def _lstm_kernel(x_ref, w_ih_ref, w_hh_ref, b_ref, out_ref, gx_sc, *, T, Bp, H):
    """Single-layer LSTM forward over the whole (short) sequence.

    x_ref   : (T*Bp, D)   bf16  time-major, row index = t*Bp + b (batch padded to Bp)
    w_ih_ref: (D, 4H)     bf16  gate columns in [i, f, o, g] order
    w_hh_ref: (H, 4H)     bf16  gate columns in [i, f, o, g] order
    b_ref   : (1, 4H)     f32   b_ih + b_hh, [i, f, o, g] order
    out_ref : (T*Bp, H)   f32
    gx_sc   : (T*Bp, 4H)  f32   hoisted input projection (x @ W_ih + b)
    """
    # Hoisted input projection + bias for ALL timesteps: one MXU call (M = T*Bp),
    # off the serial dependency chain.
    gx_sc[...] = (
        jnp.dot(x_ref[...], w_ih_ref[...], preferred_element_type=jnp.float32)
        + b_ref[...]
    )

    # Recurrent weight read ONCE; kept resident across the whole recurrence
    # instead of re-issuing ~32 vreg loads per unrolled step.
    w_hh = w_hh_ref[...]

    # h_0 = c_0 = 0 (PyTorch default when no initial state is passed).
    h = jnp.zeros((Bp, H), jnp.float32)
    c = jnp.zeros((Bp, H), jnp.float32)

    # T is small and static: plain Python unroll -> every slice start below is a
    # compile-time constant and every access is a full, 8-aligned tile.
    for t in range(T):
        row = t * Bp
        # Serial path: only the recurrent matmul (bf16 operands, f32 accumulate).
        gates = gx_sc[row:row + Bp, :] + jnp.dot(
            h.astype(jnp.bfloat16), w_hh, preferred_element_type=jnp.float32
        )  # (Bp, 4H), gate order [i, f, o, g]
        ifo = jax.nn.sigmoid(gates[:, : 3 * H])   # one contiguous EUP slice
        g = jnp.tanh(gates[:, 3 * H:])
        i = ifo[:, :H]
        f = ifo[:, H: 2 * H]
        o = ifo[:, 2 * H: 3 * H]
        c = f * c + i * g
        h = o * jnp.tanh(c)
        # Full aligned (Bp, H) store at a static offset; not on the h/c chain,
        # so it can be hidden under the next step's MXU/EUP latency.
        out_ref[row:row + Bp, :] = h.astype(out_ref.dtype)


def text_model_forward(x, w_ih, w_hh, b_ih, b_hh):
    """x: (B, T, D) float32. Returns (B, T, H) float32 (full LSTM output sequence)."""
    B, T, D = x.shape
    H = w_hh.shape[1]
    assert w_ih.shape == (4 * H, D) and w_hh.shape == (4 * H, H)

    # Pad batch to an 8-sublane multiple so per-step tiles are aligned/unmasked.
    Bp = max(8, ((B + 7) // 8) * 8)

    def reorder_gates(a):
        # PyTorch row-chunk order [i, f, g, o] -> [i, f, o, g]
        return jnp.concatenate([a[: 2 * H], a[3 * H:], a[2 * H: 3 * H]], axis=0)

    # Pre-transposed, gate-reordered, bf16 MXU operands.
    w_ih_t = jnp.transpose(reorder_gates(w_ih)).astype(jnp.bfloat16)   # (D, 4H)
    w_hh_t = jnp.transpose(reorder_gates(w_hh)).astype(jnp.bfloat16)   # (H, 4H)
    b = reorder_gates(b_ih + b_hh).reshape(1, 4 * H).astype(jnp.float32)

    # Time-major, batch zero-padded to Bp, flattened to (T*Bp, D); bf16 halves
    # the HBM->VMEM traffic too. Padded rows see x=0 -> independent garbage h
    # that is sliced away below (LSTM is independent per batch row).
    x_tm = jnp.transpose(x, (1, 0, 2))                      # (T, B, D)
    x_pad = jnp.pad(x_tm, ((0, 0), (0, Bp - B), (0, 0)))    # (T, Bp, D)
    x_flat = x_pad.reshape(T * Bp, D).astype(jnp.bfloat16)  # (T*Bp, D)

    kernel = functools.partial(_lstm_kernel, T=T, Bp=Bp, H=H)
    out_flat = pl.pallas_call(
        kernel,
        out_shape=jax.ShapeDtypeStruct((T * Bp, H), jnp.float32),
        in_specs=[pl.BlockSpec(memory_space=pltpu.MemorySpace.VMEM)] * 4,
        out_specs=pl.BlockSpec(memory_space=pltpu.MemorySpace.VMEM),
        scratch_shapes=[
            pltpu.VMEM((T * Bp, 4 * H), jnp.float32),  # hoisted gate projection
        ],
    )(x_flat, w_ih_t, w_hh_t, b)

    out = out_flat.reshape(T, Bp, H)[:, :B, :]   # drop padded batch rows
    return jnp.transpose(out, (1, 0, 2))         # (B, T, H)


def lstm_reference(x, w_ih, w_hh, b_ih, b_hh):
    """Pure-JAX f32 reference (matches torch.nn.LSTM forward, batch_first)."""
    B, T, D = x.shape
    H = w_hh.shape[1]
    b = b_ih + b_hh

    def step(carry, x_t):
        h, c = carry
        gates = x_t @ w_ih.T + h @ w_hh.T + b
        i = jax.nn.sigmoid(gates[:, 0 * H:1 * H])
        f = jax.nn.sigmoid(gates[:, 1 * H:2 * H])
        g = jnp.tanh(gates[:, 2 * H:3 * H])
        o = jax.nn.sigmoid(gates[:, 3 * H:4 * H])
        c = f * c + i * g
        h = o * jnp.tanh(c)
        return (h, c), h

    h0 = jnp.zeros((B, H), jnp.float32)
    c0 = jnp.zeros((B, H), jnp.float32)
    _, hs = jax.lax.scan(step, (h0, c0), jnp.transpose(x, (1, 0, 2)))
    return jnp.transpose(hs, (1, 0, 2))


if __name__ == "__main__":
    # Small shapes consistent with the module's forward:
    #   qus_embedding (batch, seq, qus_embedding_dim) -> output (batch, seq, lstm_n_hidden)
    B, T, D, H = 2, 8, 32, 128

    key = jax.random.PRNGKey(0)
    kx, kwi, kwh, kbi, kbh = jax.random.split(key, 5)

    scale = 1.0 / jnp.sqrt(H)  # same scale as PyTorch's default uniform init
    x = jax.random.normal(kx, (B, T, D), jnp.float32)
    w_ih = jax.random.uniform(kwi, (4 * H, D), jnp.float32, -scale, scale)
    w_hh = jax.random.uniform(kwh, (4 * H, H), jnp.float32, -scale, scale)
    b_ih = jax.random.uniform(kbi, (4 * H,), jnp.float32, -scale, scale)
    b_hh = jax.random.uniform(kbh, (4 * H,), jnp.float32, -scale, scale)

    out = jax.block_until_ready(text_model_forward(x, w_ih, w_hh, b_ih, b_hh))
    ref = jax.block_until_ready(lstm_reference(x, w_ih, w_hh, b_ih, b_hh))

    assert out.shape == (B, T, H), out.shape
    err = float(jnp.max(jnp.abs(out - ref)))
    assert err < 5e-2, err  # bf16 MXU operands, f32 accumulation/elementwise

    print("KERNEL_OK")
</pallas_src>

<mosaic_0001>
module attributes {stable_mosaic.version = 11 : i64} {
  func.func @_lstm_kernel(%arg0: memref<64x32xbf16, #tpu.memory_space<vmem>>, %arg1: memref<32x512xbf16, #tpu.memory_space<vmem>>, %arg2: memref<128x512xbf16, #tpu.memory_space<vmem>>, %arg3: memref<1x512xf32, #tpu.memory_space<vmem>>, %arg4: memref<64x128xf32, #tpu.memory_space<vmem>>, %arg5: memref<64x512xf32, #tpu.memory_space<vmem>>) attributes {dimension_semantics = [], scalar_prefetch = 0 : i64, scratch_operands = 1 : i64, tpu.core_type = #tpu.core_type<tc>} {
    %c0 = arith.constant 0 : index
    %c0_0 = arith.constant 0 : index
    %0 = vector.load %arg0[%c0, %c0_0] : memref<64x32xbf16, #tpu.memory_space<vmem>>, vector<64x32xbf16>
    %c0_1 = arith.constant 0 : index
    %c0_2 = arith.constant 0 : index
    %1 = vector.load %arg1[%c0_1, %c0_2] : memref<32x512xbf16, #tpu.memory_space<vmem>>, vector<32x512xbf16>
    %cst = arith.constant dense<0.000000e+00> : vector<64x512xf32>
    %2 = tpu.matmul %0, %1, %cst {dimension_numbers = #tpu.dot_dimension_numbers<[1], [0], [0], [1], [0, 0, 1, 1], [], []>} : vector<64x32xbf16>, vector<32x512xbf16>, vector<64x512xf32> -> vector<64x512xf32>
    %c0_3 = arith.constant 0 : index
    %c0_4 = arith.constant 0 : index
    %3 = vector.load %arg3[%c0_3, %c0_4] : memref<1x512xf32, #tpu.memory_space<vmem>>, vector<1x512xf32>
    %4 = vector.broadcast %3 : vector<1x512xf32> to vector<64x512xf32>
    %5 = arith.addf %2, %4 : vector<64x512xf32>
    %c0_5 = arith.constant 0 : index
    %c0_6 = arith.constant 0 : index
    %6 = vector.load %arg5[%c0_5, %c0_6] : memref<64x512xf32, #tpu.memory_space<vmem>>, vector<64x512xf32>
    tpu.vector_store %arg5[%c0_5, %c0_6], %5 {strides = array<i32>} : memref<64x512xf32, #tpu.memory_space<vmem>>, vector<64x512xf32>,
    %c0_7 = arith.constant 0 : index
    %c0_8 = arith.constant 0 : index
    %7 = vector.load %arg2[%c0_7, %c0_8] : memref<128x512xbf16, #tpu.memory_space<vmem>>, vector<128x512xbf16>
    %cst_9 = arith.constant 0.000000e+00 : f32
    %8 = vector.broadcast %cst_9 : f32 to vector<8x128xf32>
    %cst_10 = arith.constant 0.000000e+00 : f32
    %9 = vector.broadcast %cst_10 : f32 to vector<8x128xf32>
    %c0_11 = arith.constant 0 : index
    %c0_12 = arith.constant 0 : index
    %10 = vector.load %arg5[%c0_11, %c0_12] : memref<64x512xf32, #tpu.memory_space<vmem>>, vector<8x512xf32>
    %11 = arith.truncf %8 : vector<8x128xf32> to vector<8x128xbf16>
    %cst_13 = arith.constant dense<0.000000e+00> : vector<8x512xf32>
    %12 = tpu.matmul %11, %7, %cst_13 {dimension_numbers = #tpu.dot_dimension_numbers<[1], [0], [0], [1], [0, 0, 1, 1], [], []>} : vector<8x128xbf16>, vector<128x512xbf16>, vector<8x512xf32> -> vector<8x512xf32>
    %13 = arith.addf %10, %12 : vector<8x512xf32>
    %14 = vector.extract_strided_slice %13 {offsets = [0, 0], sizes = [8, 384], strides = [1, 1]} : vector<8x512xf32> to vector<8x384xf32>
    %15 = arith.negf %14 : vector<8x384xf32>
    %16 = math.exp %15 : vector<8x384xf32>
    %cst_14 = arith.constant 1.000000e+00 : f32
    %17 = vector.broadcast %cst_14 : f32 to vector<8x384xf32>
    %18 = arith.addf %17, %16 : vector<8x384xf32>
    %19 = arith.divf %17, %18 : vector<8x384xf32>
    %20 = vector.extract_strided_slice %13 {offsets = [0, 384], sizes = [8, 128], strides = [1, 1]} : vector<8x512xf32> to vector<8x128xf32>
    %21 = math.tanh %20 : vector<8x128xf32>
    %22 = vector.extract_strided_slice %19 {offsets = [0, 0], sizes = [8, 128], strides = [1, 1]} : vector<8x384xf32> to vector<8x128xf32>
    %23 = vector.extract_strided_slice %19 {offsets = [0, 128], sizes = [8, 128], strides = [1, 1]} : vector<8x384xf32> to vector<8x128xf32>
    %24 = vector.extract_strided_slice %19 {offsets = [0, 256], sizes = [8, 128], strides = [1, 1]} : vector<8x384xf32> to vector<8x128xf32>
    %25 = arith.mulf %23, %9 : vector<8x128xf32>
    %26 = arith.mulf %22, %21 : vector<8x128xf32>
    %27 = arith.addf %25, %26 : vector<8x128xf32>
    %28 = math.tanh %27 : vector<8x128xf32>
    %29 = arith.mulf %24, %28 : vector<8x128xf32>
    %c0_15 = arith.constant 0 : index
    %c0_16 = arith.constant 0 : index
    %30 = vector.load %arg4[%c0_15, %c0_16] : memref<64x128xf32, #tpu.memory_space<vmem>>, vector<8x128xf32>
    tpu.vector_store %arg4[%c0_15, %c0_16], %29 {strides = array<i32>} : memref<64x128xf32, #tpu.memory_space<vmem>>, vector<8x128xf32>,
    %c8 = arith.constant 8 : index
    %c0_17 = arith.constant 0 : index
    %31 = vector.load %arg5[%c8, %c0_17] : memref<64x512xf32, #tpu.memory_space<vmem>>, vector<8x512xf32>
    %32 = arith.truncf %29 : vector<8x128xf32> to vector<8x128xbf16>
    %cst_18 = arith.constant dense<0.000000e+00> : vector<8x512xf32>
    %33 = tpu.matmul %32, %7, %cst_18 {dimension_numbers = #tpu.dot_dimension_numbers<[1], [0], [0], [1], [0, 0, 1, 1], [], []>} : vector<8x128xbf16>, vector<128x512xbf16>, vector<8x512xf32> -> vector<8x512xf32>
    %34 = arith.addf %31, %33 : vector<8x512xf32>
    %35 = vector.extract_strided_slice %34 {offsets = [0, 0], sizes = [8, 384], strides = [1, 1]} : vector<8x512xf32> to vector<8x384xf32>
    %36 = arith.negf %35 : vector<8x384xf32>
    %37 = math.exp %36 : vector<8x384xf32>
    %cst_19 = arith.constant 1.000000e+00 : f32
    %38 = vector.broadcast %cst_19 : f32 to vector<8x384xf32>
    %39 = arith.addf %38, %37 : vector<8x384xf32>
    %40 = arith.divf %38, %39 : vector<8x384xf32>
    %41 = vector.extract_strided_slice %34 {offsets = [0, 384], sizes = [8, 128], strides = [1, 1]} : vector<8x512xf32> to vector<8x128xf32>
    %42 = math.tanh %41 : vector<8x128xf32>
    %43 = vector.extract_strided_slice %40 {offsets = [0, 0], sizes = [8, 128], strides = [1, 1]} : vector<8x384xf32> to vector<8x128xf32>
    %44 = vector.extract_strided_slice %40 {offsets = [0, 128], sizes = [8, 128], strides = [1, 1]} : vector<8x384xf32> to vector<8x128xf32>
    %45 = vector.extract_strided_slice %40 {offsets = [0, 256], sizes = [8, 128], strides = [1, 1]} : vector<8x384xf32> to vector<8x128xf32>
    %46 = arith.mulf %44, %27 : vector<8x128xf32>
    %47 = arith.mulf %43, %42 : vector<8x128xf32>
    %48 = arith.addf %46, %47 : vector<8x128xf32>
    %49 = math.tanh %48 : vector<8x128xf32>
    %50 = arith.mulf %45, %49 : vector<8x128xf32>
    %c8_20 = arith.constant 8 : index
    %c0_21 = arith.constant 0 : index
    %51 = vector.load %arg4[%c8_20, %c0_21] : memref<64x128xf32, #tpu.memory_space<vmem>>, vector<8x128xf32>
    tpu.vector_store %arg4[%c8_20, %c0_21], %50 {strides = array<i32>} : memref<64x128xf32, #tpu.memory_space<vmem>>, vector<8x128xf32>,
    %c16 = arith.constant 16 : index
    %c0_22 = arith.constant 0 : index
    %52 = vector.load %arg5[%c16, %c0_22] : memref<64x512xf32, #tpu.memory_space<vmem>>, vector<8x512xf32>
    %53 = arith.truncf %50 : vector<8x128xf32> to vector<8x128xbf16>
    %cst_23 = arith.constant dense<0.000000e+00> : vector<8x512xf32>
    %54 = tpu.matmul %53, %7, %cst_23 {dimension_numbers = #tpu.dot_dimension_numbers<[1], [0], [0], [1], [0, 0, 1, 1], [], []>} : vector<8x128xbf16>, vector<128x512xbf16>, vector<8x512xf32> -> vector<8x512xf32>
    %55 = arith.addf %52, %54 : vector<8x512xf32>
    %56 = vector.extract_strided_slice %55 {offsets = [0, 0], sizes = [8, 384], strides = [1, 1]} : vector<8x512xf32> to vector<8x384xf32>
    %57 = arith.negf %56 : vector<8x384xf32>
    %58 = math.exp %57 : vector<8x384xf32>
    %cst_24 = arith.constant 1.000000e+00 : f32
    %59 = vector.broadcast %cst_24 : f32 to vector<8x384xf32>
    %60 = arith.addf %59, %58 : vector<8x384xf32>
    %61 = arith.divf %59, %60 : vector<8x384xf32>
    %62 = vector.extract_strided_slice %55 {offsets = [0, 384], sizes = [8, 128], strides = [1, 1]} : vector<8x512xf32> to vector<8x128xf32>
    %63 = math.tanh %62 : vector<8x128xf32>
    %64 = vector.extract_strided_slice %61 {offsets = [0, 0], sizes = [8, 128], strides = [1, 1]} : vector<8x384xf32> to vector<8x128xf32>
    %65 = vector.extract_strided_slice %61 {offsets = [0, 128], sizes = [8, 128], strides = [1, 1]} : vector<8x384xf32> to vector<8x128xf32>
    %66 = vector.extract_strided_slice %61 {offsets = [0, 256], sizes = [8, 128], strides = [1, 1]} : vector<8x384xf32> to vector<8x128xf32>
    %67 = arith.mulf %65, %48 : vector<8x128xf32>
    %68 = arith.mulf %64, %63 : vector<8x128xf32>
    %69 = arith.addf %67, %68 : vector<8x128xf32>
    %70 = math.tanh %69 : vector<8x128xf32>
    %71 = arith.mulf %66, %70 : vector<8x128xf32>
    %c16_25 = arith.constant 16 : index
    %c0_26 = arith.constant 0 : index
    %72 = vector.load %arg4[%c16_25, %c0_26] : memref<64x128xf32, #tpu.memory_space<vmem>>, vector<8x128xf32>
    tpu.vector_store %arg4[%c16_25, %c0_26], %71 {strides = array<i32>} : memref<64x128xf32, #tpu.memory_space<vmem>>, vector<8x128xf32>,
    %c24 = arith.constant 24 : index
    %c0_27 = arith.constant 0 : index
    %73 = vector.load %arg5[%c24, %c0_27] : memref<64x512xf32, #tpu.memory_space<vmem>>, vector<8x512xf32>
    %74 = arith.truncf %71 : vector<8x128xf32> to vector<8x128xbf16>
    %cst_28 = arith.constant dense<0.000000e+00> : vector<8x512xf32>
    %75 = tpu.matmul %74, %7, %cst_28 {dimension_numbers = #tpu.dot_dimension_numbers<[1], [0], [0], [1], [0, 0, 1, 1], [], []>} : vector<8x128xbf16>, vector<128x512xbf16>, vector<8x512xf32> -> vector<8x512xf32>
    %76 = arith.addf %73, %75 : vector<8x512xf32>
    %77 = vector.extract_strided_slice %76 {offsets = [0, 0], sizes = [8, 384], strides = [1, 1]} : vector<8x512xf32> to vector<8x384xf32>
    %78 = arith.negf %77 : vector<8x384xf32>
    %79 = math.exp %78 : vector<8x384xf32>
    %cst_29 = arith.constant 1.000000e+00 : f32
    %80 = vector.broadcast %cst_29 : f32 to vector<8x384xf32>
    %81 = arith.addf %80, %79 : vector<8x384xf32>
    %82 = arith.divf %80, %81 : vector<8x384xf32>
    %83 = vector.extract_strided_slice %76 {offsets = [0, 384], sizes = [8, 128], strides = [1, 1]} : vector<8x512xf32> to vector<8x128xf32>
    %84 = math.tanh %83 : vector<8x128xf32>
    %85 = vector.extract_strided_slice %82 {offsets = [0, 0], sizes = [8, 128], strides = [1, 1]} : vector<8x384xf32> to vector<8x128xf32>
    %86 = vector.extract_strided_slice %82 {offsets = [0, 128], sizes = [8, 128], strides = [1, 1]} : vector<8x384xf32> to vector<8x128xf32>
    %87 = vector.extract_strided_slice %82 {offsets = [0, 256], sizes = [8, 128], strides = [1, 1]} : vector<8x384xf32> to vector<8x128xf32>
    %88 = arith.mulf %86, %69 : vector<8x128xf32>
    %89 = arith.mulf %85, %84 : vector<8x128xf32>
    %90 = arith.addf %88, %89 : vector<8x128xf32>
    %91 = math.tanh %90 : vector<8x128xf32>
    %92 = arith.mulf %87, %91 : vector<8x128xf32>
    %c24_30 = arith.constant 24 : index
    %c0_31 = arith.constant 0 : index
    %93 = vector.load %arg4[%c24_30, %c0_31] : memref<64x128xf32, #tpu.memory_space<vmem>>, vector<8x128xf32>
    tpu.vector_store %arg4[%c24_30, %c0_31], %92 {strides = array<i32>} : memref<64x128xf32, #tpu.memory_space<vmem>>, vector<8x128xf32>,
    %c32 = arith.constant 32 : index
    %c0_32 = arith.constant 0 : index
    %94 = vector.load %arg5[%c32, %c0_32] : memref<64x512xf32, #tpu.memory_space<vmem>>, vector<8x512xf32>
    %95 = arith.truncf %92 : vector<8x128xf32> to vector<8x128xbf16>
    %cst_33 = arith.constant dense<0.000000e+00> : vector<8x512xf32>
    %96 = tpu.matmul %95, %7, %cst_33 {dimension_numbers = #tpu.dot_dimension_numbers<[1], [0], [0], [1], [0, 0, 1, 1], [], []>} : vector<8x128xbf16>, vector<128x512xbf16>, vector<8x512xf32> -> vector<8x512xf32>
    %97 = arith.addf %94, %96 : vector<8x512xf32>
    %98 = vector.extract_strided_slice %97 {offsets = [0, 0], sizes = [8, 384], strides = [1, 1]} : vector<8x512xf32> to vector<8x384xf32>
    %99 = arith.negf %98 : vector<8x384xf32>
    %100 = math.exp %99 : vector<8x384xf32>
    %cst_34 = arith.constant 1.000000e+00 : f32
    %101 = vector.broadcast %cst_34 : f32 to vector<8x384xf32>
    %102 = arith.addf %101, %100 : vector<8x384xf32>
    %103 = arith.divf %101, %102 : vector<8x384xf32>
    %104 = vector.extract_strided_slice %97 {offsets = [0, 384], sizes = [8, 128], strides = [1, 1]} : vector<8x512xf32> to vector<8x128xf32>
    %105 = math.tanh %104 : vector<8x128xf32>
    %106 = vector.extract_strided_slice %103 {offsets = [0, 0], sizes = [8, 128], strides = [1, 1]} : vector<8x384xf32> to vector<8x128xf32>
    %107 = vector.extract_strided_slice %103 {offsets = [0, 128], sizes = [8, 128], strides = [1, 1]} : vector<8x384xf32> to vector<8x128xf32>
    %108 = vector.extract_strided_slice %103 {offsets = [0, 256], sizes = [8, 128], strides = [1, 1]} : vector<8x384xf32> to vector<8x128xf32>
    %109 = arith.mulf %107, %90 : vector<8x128xf32>
    %110 = arith.mulf %106, %105 : vector<8x128xf32>
    %111 = arith.addf %109, %110 : vector<8x128xf32>
    %112 = math.tanh %111 : vector<8x128xf32>
    %113 = arith.mulf %108, %112 : vector<8x128xf32>
    %c32_35 = arith.constant 32 : index
    %c0_36 = arith.constant 0 : index
    %114 = vector.load %arg4[%c32_35, %c0_36] : memref<64x128xf32, #tpu.memory_space<vmem>>, vector<8x128xf32>
    tpu.vector_store %arg4[%c32_35, %c0_36], %113 {strides = array<i32>} : memref<64x128xf32, #tpu.memory_space<vmem>>, vector<8x128xf32>,
    %c40 = arith.constant 40 : index
    %c0_37 = arith.constant 0 : index
    %115 = vector.load %arg5[%c40, %c0_37] : memref<64x512xf32, #tpu.memory_space<vmem>>, vector<8x512xf32>
    %116 = arith.truncf %113 : vector<8x128xf32> to vector<8x128xbf16>
    %cst_38 = arith.constant dense<0.000000e+00> : vector<8x512xf32>
    %117 = tpu.matmul %116, %7, %cst_38 {dimension_numbers = #tpu.dot_dimension_numbers<[1], [0], [0], [1], [0, 0, 1, 1], [], []>} : vector<8x128xbf16>, vector<128x512xbf16>, vector<8x512xf32> -> vector<8x512xf32>
    %118 = arith.addf %115, %117 : vector<8x512xf32>
    %119 = vector.extract_strided_slice %118 {offsets = [0, 0], sizes = [8, 384], strides = [1, 1]} : vector<8x512xf32> to vector<8x384xf32>
    %120 = arith.negf %119 : vector<8x384xf32>
    %121 = math.exp %120 : vector<8x384xf32>
    %cst_39 = arith.constant 1.000000e+00 : f32
    %122 = vector.broadcast %cst_39 : f32 to vector<8x384xf32>
    %123 = arith.addf %122, %121 : vector<8x384xf32>
    %124 = arith.divf %122, %123 : vector<8x384xf32>
    %125 = vector.extract_strided_slice %118 {offsets = [0, 384], sizes = [8, 128], strides = [1, 1]} : vector<8x512xf32> to vector<8x128xf32>
    %126 = math.tanh %125 : vector<8x128xf32>
    %127 = vector.extract_strided_slice %124 {offsets = [0, 0], sizes = [8, 128], strides = [1, 1]} : vector<8x384xf32> to vector<8x128xf32>
    %128 = vector.extract_strided_slice %124 {offsets = [0, 128], sizes = [8, 128], strides = [1, 1]} : vector<8x384xf32> to vector<8x128xf32>
    %129 = vector.extract_strided_slice %124 {offsets = [0, 256], sizes = [8, 128], strides = [1, 1]} : vector<8x384xf32> to vector<8x128xf32>
    %130 = arith.mulf %128, %111 : vector<8x128xf32>
    %131 = arith.mulf %127, %126 : vector<8x128xf32>
    %132 = arith.addf %130, %131 : vector<8x128xf32>
    %133 = math.tanh %132 : vector<8x128xf32>
    %134 = arith.mulf %129, %133 : vector<8x128xf32>
    %c40_40 = arith.constant 40 : index
    %c0_41 = arith.constant 0 : index
    %135 = vector.load %arg4[%c40_40, %c0_41] : memref<64x128xf32, #tpu.memory_space<vmem>>, vector<8x128xf32>
    tpu.vector_store %arg4[%c40_40, %c0_41], %134 {strides = array<i32>} : memref<64x128xf32, #tpu.memory_space<vmem>>, vector<8x128xf32>,
    %c48 = arith.constant 48 : index
    %c0_42 = arith.constant 0 : index
    %136 = vector.load %arg5[%c48, %c0_42] : memref<64x512xf32, #tpu.memory_space<vmem>>, vector<8x512xf32>
    %137 = arith.truncf %134 : vector<8x128xf32> to vector<8x128xbf16>
    %cst_43 = arith.constant dense<0.000000e+00> : vector<8x512xf32>
    %138 = tpu.matmul %137, %7, %cst_43 {dimension_numbers = #tpu.dot_dimension_numbers<[1], [0], [0], [1], [0, 0, 1, 1], [], []>} : vector<8x128xbf16>, vector<128x512xbf16>, vector<8x512xf32> -> vector<8x512xf32>
    %139 = arith.addf %136, %138 : vector<8x512xf32>
    %140 = vector.extract_strided_slice %139 {offsets = [0, 0], sizes = [8, 384], strides = [1, 1]} : vector<8x512xf32> to vector<8x384xf32>
    %141 = arith.negf %140 : vector<8x384xf32>
    %142 = math.exp %141 : vector<8x384xf32>
    %cst_44 = arith.constant 1.000000e+00 : f32
    %143 = vector.broadcast %cst_44 : f32 to vector<8x384xf32>
    %144 = arith.addf %143, %142 : vector<8x384xf32>
    %145 = arith.divf %143, %144 : vector<8x384xf32>
    %146 = vector.extract_strided_slice %139 {offsets = [0, 384], sizes = [8, 128], strides = [1, 1]} : vector<8x512xf32> to vector<8x128xf32>
    %147 = math.tanh %146 : vector<8x128xf32>
    %148 = vector.extract_strided_slice %145 {offsets = [0, 0], sizes = [8, 128], strides = [1, 1]} : vector<8x384xf32> to vector<8x128xf32>
    %149 = vector.extract_strided_slice %145 {offsets = [0, 128], sizes = [8, 128], strides = [1, 1]} : vector<8x384xf32> to vector<8x128xf32>
    %150 = vector.extract_strided_slice %145 {offsets = [0, 256], sizes = [8, 128], strides = [1, 1]} : vector<8x384xf32> to vector<8x128xf32>
    %151 = arith.mulf %149, %132 : vector<8x128xf32>
    %152 = arith.mulf %148, %147 : vector<8x128xf32>
    %153 = arith.addf %151, %152 : vector<8x128xf32>
    %154 = math.tanh %153 : vector<8x128xf32>
    %155 = arith.mulf %150, %154 : vector<8x128xf32>
    %c48_45 = arith.constant 48 : index
    %c0_46 = arith.constant 0 : index
    %156 = vector.load %arg4[%c48_45, %c0_46] : memref<64x128xf32, #tpu.memory_space<vmem>>, vector<8x128xf32>
    tpu.vector_store %arg4[%c48_45, %c0_46], %155 {strides = array<i32>} : memref<64x128xf32, #tpu.memory_space<vmem>>, vector<8x128xf32>,
    %c56 = arith.constant 56 : index
    %c0_47 = arith.constant 0 : index
    %157 = vector.load %arg5[%c56, %c0_47] : memref<64x512xf32, #tpu.memory_space<vmem>>, vector<8x512xf32>
    %158 = arith.truncf %155 : vector<8x128xf32> to vector<8x128xbf16>
    %cst_48 = arith.constant dense<0.000000e+00> : vector<8x512xf32>
    %159 = tpu.matmul %158, %7, %cst_48 {dimension_numbers = #tpu.dot_dimension_numbers<[1], [0], [0], [1], [0, 0, 1, 1], [], []>} : vector<8x128xbf16>, vector<128x512xbf16>, vector<8x512xf32> -> vector<8x512xf32>
    %160 = arith.addf %157, %159 : vector<8x512xf32>
    %161 = vector.extract_strided_slice %160 {offsets = [0, 0], sizes = [8, 384], strides = [1, 1]} : vector<8x512xf32> to vector<8x384xf32>
    %162 = arith.negf %161 : vector<8x384xf32>
    %163 = math.exp %162 : vector<8x384xf32>
    %cst_49 = arith.constant 1.000000e+00 : f32
    %164 = vector.broadcast %cst_49 : f32 to vector<8x384xf32>
    %165 = arith.addf %164, %163 : vector<8x384xf32>
    %166 = arith.divf %164, %165 : vector<8x384xf32>
    %167 = vector.extract_strided_slice %160 {offsets = [0, 384], sizes = [8, 128], strides = [1, 1]} : vector<8x512xf32> to vector<8x128xf32>
    %168 = math.tanh %167 : vector<8x128xf32>
    %169 = vector.extract_strided_slice %166 {offsets = [0, 0], sizes = [8, 128], strides = [1, 1]} : vector<8x384xf32> to vector<8x128xf32>
    %170 = vector.extract_strided_slice %166 {offsets = [0, 128], sizes = [8, 128], strides = [1, 1]} : vector<8x384xf32> to vector<8x128xf32>
    %171 = vector.extract_strided_slice %166 {offsets = [0, 256], sizes = [8, 128], strides = [1, 1]} : vector<8x384xf32> to vector<8x128xf32>
    %172 = arith.mulf %170, %153 : vector<8x128xf32>
    %173 = arith.mulf %169, %168 : vector<8x128xf32>
    %174 = arith.addf %172, %173 : vector<8x128xf32>
    %175 = math.tanh %174 : vector<8x128xf32>
    %176 = arith.mulf %171, %175 : vector<8x128xf32>
    %c56_50 = arith.constant 56 : index
    %c0_51 = arith.constant 0 : index
    %177 = vector.load %arg4[%c56_50, %c0_51] : memref<64x128xf32, #tpu.memory_space<vmem>>, vector<8x128xf32>
    tpu.vector_store %arg4[%c56_50, %c0_51], %176 {strides = array<i32>} : memref<64x128xf32, #tpu.memory_space<vmem>>, vector<8x128xf32>,
    return
  }
}

</mosaic_0001>

<llo_original>
// kernel: tpu_custom_call.1
$region0: #{tpu_custom_call.1}
  #allocation0 [shape = 'u32[]', space=smem, size = 0x4, offset = 0x4, fixed_abs, tag = 'smem constant byte address 0x4 - core index']
  #allocation1 [shape = 'u32[72,128]{1,0:T(1,128)}', space=vmem, size = 0x9000, scoped, tag = 'internal scratch']
  #allocation2 [shape = 'f32[64,512]{1,0:T(8,128)}', space=vmem, size = 0x20000, scoped, tag = 'scratch operand']
  %s0 = inlined_call_operand.vmem [shape: bf16[64,32], index: 0, kind: input, shape index: {}]
  %s1 = inlined_call_operand.hbm [shape: bf16[32,512], index: 1, kind: input, shape index: {}]
  %s2 = inlined_call_operand.hbm [shape: bf16[128,512], index: 2, kind: input, shape index: {}]
  %s3 = inlined_call_operand.vmem [shape: f32[1,512], index: 3, kind: input, shape index: {}]
  %s4 = inlined_call_operand.hbm [shape: f32[64,128], index: 4, kind: output, shape index: {}]
  %s5 = sld [smem:[#allocation0]]
  $region34: #{tpu_custom_call.1} parent=0
    _
  %s7 = ssub.s32 1, %s5
  %s8 = scalar_select 0, %s7, %s5
  $region1: #{tpu_custom_call.1} parent=0
    #allocation3 [shape = 'u8[32768]{0}', space=vmem, size = 0x8000, scoped, tag = 'input window, operand 1, single buffered']
    #allocation4 [shape = 's32[1]{0}', space=sflag, size = 0x4, scoped, tag = 'scoped memory for tpu_custom_call.1']
    #allocation5 [shape = 's32[1]{0}', space=sflag, size = 0x4, scoped, tag = 'scoped memory for tpu_custom_call.1']
    #allocation6 [shape = 'u8[131072]{0}', space=vmem, size = 0x20000, scoped, tag = 'input window, operand 2, single buffered']
    #allocation7 [shape = 's32[1]{0}', space=sflag, size = 0x4, scoped, tag = 'scoped memory for tpu_custom_call.1']
    #allocation8 [shape = 'u8[32768]{0}', space=vmem, size = 0x8000, scoped, tag = 'output window, operand 0, single buffered']
    %9 = vsyncpa [#allocation4], 0
    %10 = vsyncpa [#allocation7], 0
    %11 = vsyncpa [#allocation5], 0
    // Predicated region
    $region2: #{tpu_custom_call.1} parent=1 // pred_check
      _
    $region3: #{tpu_custom_call.1} parent=1 // pred_check_branch
      %13 = sbr.rel (0) target = $region5
    $region4: #{tpu_custom_call.1} parent=1 // pred_region
      _
    $region5: #{tpu_custom_call.1} parent=1 // pred_fallthru
      _
    // Predicated region
    $region6: #{tpu_custom_call.1} parent=1 // pred_check
      _
    $region7: #{tpu_custom_call.1} parent=1 // pred_check_branch
      %15 = sbr.rel (0) target = $region9
    $region8: #{tpu_custom_call.1} parent=1 // pred_region
      %17 = vsyncadd [#allocation4], 0
      %s18 = sshll.u32 %s1, 4
      %s19 = int_to_ptr.hbm [resolvable:$true] %s18
      %s20 = sshll.u32 [#allocation3], 4
      %s21 = int_to_ptr.vmem [resolvable:$true] %s20
      %26 = dma.hbm_to_vmem [thread:$0]  %s19, 1024, %s21, [#allocation4], 256, 256, 16
    $region9: #{tpu_custom_call.1} parent=1 // pred_fallthru
      _
    // Predicated region
    $region10: #{tpu_custom_call.1} parent=1 // pred_check
      _
    $region11: #{tpu_custom_call.1} parent=1 // pred_check_branch
      %28 = sbr.rel (0) target = $region13
    $region12: #{tpu_custom_call.1} parent=1 // pred_region
      %30 = vsyncadd [#allocation7], 0
      %s31 = sshll.u32 %s2, 4
      %s32 = int_to_ptr.hbm [resolvable:$true] %s31
      %s33 = sshll.u32 [#allocation6], 4
      %s34 = int_to_ptr.vmem [resolvable:$true] %s33
      %39 = dma.hbm_to_vmem [thread:$0]  %s32, 4096, %s34, [#allocation7], 256, 256, 16
    $region13: #{tpu_custom_call.1} parent=1 // pred_fallthru
      _
    // Predicated region
    $region14: #{tpu_custom_call.1} parent=1 // pred_check
      _
    $region15: #{tpu_custom_call.1} parent=1 // pred_check_branch
      %41 = sbr.rel (0) target = $region17
    $region16: #{tpu_custom_call.1} parent=1 // pred_region
      _
    $region17: #{tpu_custom_call.1} parent=1 // pred_fallthru
      _
    // Predicated region
    $region18: #{tpu_custom_call.1} parent=1 // pred_check
      _
    $region19: #{tpu_custom_call.1} parent=1 // pred_check_branch
      %43 = sbr.rel (0) target = $region21
    $region20: #{tpu_custom_call.1} parent=1 // pred_region
      %45 = dma.done [#allocation4], 1024
    $region21: #{tpu_custom_call.1} parent=1 // pred_fallthru
      _
    // Predicated region
    $region22: #{tpu_custom_call.1} parent=1 // pred_check
      _
    $region23: #{tpu_custom_call.1} parent=1 // pred_check_branch
      %47 = sbr.rel (0) target = $region25
    $region24: #{tpu_custom_call.1} parent=1 // pred_region
      %49 = dma.done [#allocation7], 4096
    $region25: #{tpu_custom_call.1} parent=1 // pred_fallthru
      _
    %v51 = vld [vmem:[%s0] sm:$0xf]
    %v52 = vld [vmem:[%s0 + $0x4] sm:$0xf]
    %v53 = vld [vmem:[%s0 + $0x8] sm:$0xf]
    %v54 = vld [vmem:[%s0 + $0xc] sm:$0xf]
    %v55 = vld [vmem:[%s0 + $0x10] sm:$0xf]
    %v56 = vld [vmem:[%s0 + $0x14] sm:$0xf]
    %v57 = vld [vmem:[%s0 + $0x18] sm:$0xf]
    %v58 = vld [vmem:[%s0 + $0x1c] sm:$0xf]
    %v59 = vld [vmem:[#allocation3] sm:$0xff]
    %v60 = vld [vmem:[#allocation3 + $0x8] sm:$0xff]
    %v61 = vld [vmem:[#allocation3 + $0x10] sm:$0xff]
    %v62 = vld [vmem:[#allocation3 + $0x18] sm:$0xff]
    %v63 = vld [vmem:[#allocation3 + $0x20] sm:$0xff]
    %v64 = vld [vmem:[#allocation3 + $0x28] sm:$0xff]
    %v65 = vld [vmem:[#allocation3 + $0x30] sm:$0xff]
    %v66 = vld [vmem:[#allocation3 + $0x38] sm:$0xff]
    %v67 = vld [vmem:[%s3] sm:$0xf]
    %v69 = vperm.slane %v67, 0
    %v70 = vperm.slane %v67, 1
    %v71 = vperm.slane %v67, 2
    %v72 = vperm.slane %v67, 3
    %v85 = vunpack.c.l.b16 %v51
    %v86 = vunpack.c.l.b16 %v52
    %v87 = vunpack.c.l.b16 %v53
    %v88 = vunpack.c.l.b16 %v54
    %v89 = vunpack.c.l.b16 %v55
    %v90 = vunpack.c.l.b16 %v56
    %v91 = vunpack.c.l.b16 %v57
    %v92 = vunpack.c.l.b16 %v58
    %v93 = vpack.c.b16 %v86, %v85
    %v94 = vpack.c.b16 %v88, %v87
    %v95 = vpack.c.b16 %v90, %v89
    %v96 = vpack.c.b16 %v92, %v91
    %v105 = vunpack.c.l.b16 %v59
    %v106 = vunpack.c.h.b16 %v59
    %v107 = vunpack.c.l.b16 %v60
    %v108 = vunpack.c.h.b16 %v60
    %v109 = vunpack.c.l.b16 %v61
    %v110 = vunpack.c.h.b16 %v61
    %v111 = vunpack.c.l.b16 %v62
    %v112 = vunpack.c.h.b16 %v62
    %v113 = vunpack.c.l.b16 %v63
    %v114 = vunpack.c.h.b16 %v63
    %v115 = vunpack.c.l.b16 %v64
    %v116 = vunpack.c.h.b16 %v64
    %v117 = vunpack.c.l.b16 %v65
    %v118 = vunpack.c.h.b16 %v65
    %v119 = vunpack.c.l.b16 %v66
    %v120 = vunpack.c.h.b16 %v66
    %v121 = vpack.c.b16 %v109, %v105
    %v122 = vpack.c.b16 %v110, %v106
    %v123 = vpack.c.b16 %v111, %v107
    %v124 = vpack.c.b16 %v112, %v108
    %v125 = vpack.c.b16 %v117, %v113
    %v126 = vpack.c.b16 %v118, %v114
    %v127 = vpack.c.b16 %v119, %v115
    %v128 = vpack.c.b16 %v120, %v116
    %vm137 = vcmask 261120
    %v139 = vsel %vm137, %v93, 0
    %v142 = vsel %vm137, %v94, 0
    %v145 = vsel %vm137, %v95, 0
    %v148 = vsel %vm137, %v96, 0
    %150 = vmatpush.bf16.msra.mxu0 0
    %151 = vmatpush.bf16.msra.mxu0 0
    %152 = vmatpush.bf16.msra.mxu0 0
    %153 = vmatpush.bf16.msra.mxu0 0
    %154 = vmatpush.bf16.msra.mxu0 0
    %155 = vmatpush.bf16.msra.mxu0 0
    %156 = vmatpush.bf16.msra.mxu0 %v125
    %157 = vmatpush.bf16.msra.mxu0 %v121
    %158 = vmatmul.bf16.gmra.mxu0 %v139
    %v159 = vpop.f32.mrf.mxu0
    %v160 = vadd.f32 %v69, %v159
    %v161 = vpop.f32.mrf.mxu0
    %v162 = vadd.f32 %v69, %v161
    %163 = vmatmul.bf16.gmra.mxu0 %v142
    %v164 = vpop.f32.mrf.mxu0
    %v165 = vadd.f32 %v69, %v164
    %v166 = vpop.f32.mrf.mxu0
    %v167 = vadd.f32 %v69, %v166
    %168 = vmatmul.bf16.gmra.mxu0 %v145
    %v169 = vpop.f32.mrf.mxu0
    %v170 = vadd.f32 %v69, %v169
    %v171 = vpop.f32.mrf.mxu0
    %v172 = vadd.f32 %v69, %v171
    %173 = vmatmul.bf16.gmra.mxu0 %v148
    %v174 = vpop.f32.mrf.mxu0
    %v175 = vadd.f32 %v69, %v174
    %v176 = vpop.f32.mrf.mxu0
    %v177 = vadd.f32 %v69, %v176
    %178 = vdwg.mxu0
    %179 = vmatpush.bf16.msra.mxu0 0
    %180 = vmatpush.bf16.msra.mxu0 0
    %181 = vmatpush.bf16.msra.mxu0 0
    %182 = vmatpush.bf16.msra.mxu0 0
    %183 = vmatpush.bf16.msra.mxu0 0
    %184 = vmatpush.bf16.msra.mxu0 0
    %185 = vmatpush.bf16.msra.mxu0 %v126
    %186 = vmatpush.bf16.msra.mxu0 %v122
    %187 = vmatmul.bf16.gmra.mxu0 %v139
    %v188 = vpop.f32.mrf.mxu0
    %v189 = vadd.f32 %v70, %v188
    %v190 = vpop.f32.mrf.mxu0
    %v191 = vadd.f32 %v70, %v190
    %192 = vmatmul.bf16.gmra.mxu0 %v142
    %v193 = vpop.f32.mrf.mxu0
    %v194 = vadd.f32 %v70, %v193
    %v195 = vpop.f32.mrf.mxu0
    %v196 = vadd.f32 %v70, %v195
    %197 = vmatmul.bf16.gmra.mxu0 %v145
    %v198 = vpop.f32.mrf.mxu0
    %v199 = vadd.f32 %v70, %v198
    %v200 = vpop.f32.mrf.mxu0
    %v201 = vadd.f32 %v70, %v200
    %202 = vmatmul.bf16.gmra.mxu0 %v148
    %v203 = vpop.f32.mrf.mxu0
    %v204 = vadd.f32 %v70, %v203
    %v205 = vpop.f32.mrf.mxu0
    %v206 = vadd.f32 %v70, %v205
    %207 = vdwg.mxu0
    %208 = vmatpush.bf16.msra.mxu0 0
    %209 = vmatpush.bf16.msra.mxu0 0
    %210 = vmatpush.bf16.msra.mxu0 0
    %211 = vmatpush.bf16.msra.mxu0 0
    %212 = vmatpush.bf16.msra.mxu0 0
    %213 = vmatpush.bf16.msra.mxu0 0
    %214 = vmatpush.bf16.msra.mxu0 %v127
    %215 = vmatpush.bf16.msra.mxu0 %v123
    %216 = vmatmul.bf16.gmra.mxu0 %v139
    %v217 = vpop.f32.mrf.mxu0
    %v218 = vadd.f32 %v71, %v217
    %v219 = vpop.f32.mrf.mxu0
    %v220 = vadd.f32 %v71, %v219
    %221 = vmatmul.bf16.gmra.mxu0 %v142
    %v222 = vpop.f32.mrf.mxu0
    %v223 = vadd.f32 %v71, %v222
    %v224 = vpop.f32.mrf.mxu0
    %v225 = vadd.f32 %v71, %v224
    %226 = vmatmul.bf16.gmra.mxu0 %v145
    %v227 = vpop.f32.mrf.mxu0
    %v228 = vadd.f32 %v71, %v227
    %v229 = vpop.f32.mrf.mxu0
    %v230 = vadd.f32 %v71, %v229
    %231 = vmatmul.bf16.gmra.mxu0 %v148
    %v232 = vpop.f32.mrf.mxu0
    %v233 = vadd.f32 %v71, %v232
    %v234 = vpop.f32.mrf.mxu0
    %v235 = vadd.f32 %v71, %v234
    %236 = vdwg.mxu0
    %237 = vmatpush.bf16.msra.mxu0 0
    %238 = vmatpush.bf16.msra.mxu0 0
    %239 = vmatpush.bf16.msra.mxu0 0
    %240 = vmatpush.bf16.msra.mxu0 0
    %241 = vmatpush.bf16.msra.mxu0 0
    %242 = vmatpush.bf16.msra.mxu0 0
    %243 = vmatpush.bf16.msra.mxu0 %v128
    %244 = vmatpush.bf16.msra.mxu0 %v124
    %245 = vmatmul.bf16.gmra.mxu0 %v139
    %v246 = vpop.f32.mrf.mxu0
    %v247 = vadd.f32 %v72, %v246
    %v248 = vpop.f32.mrf.mxu0
    %v249 = vadd.f32 %v72, %v248
    %250 = vmatmul.bf16.gmra.mxu0 %v142
    %v251 = vpop.f32.mrf.mxu0
    %v252 = vadd.f32 %v72, %v251
    %v253 = vpop.f32.mrf.mxu0
    %v254 = vadd.f32 %v72, %v253
    %255 = vmatmul.bf16.gmra.mxu0 %v145
    %v256 = vpop.f32.mrf.mxu0
    %v257 = vadd.f32 %v72, %v256
    %v258 = vpop.f32.mrf.mxu0
    %v259 = vadd.f32 %v72, %v258
    %260 = vmatmul.bf16.gmra.mxu0 %v148
    %v261 = vpop.f32.mrf.mxu0
    %v262 = vadd.f32 %v72, %v261
    %v263 = vpop.f32.mrf.mxu0
    %v264 = vadd.f32 %v72, %v263
    %265 = vdwg.mxu0
    %266 = vst [vmem:[#allocation2] sm:$0xff] %v160
    %267 = vst [vmem:[#allocation2 + $0x8] sm:$0xff] %v189
    %268 = vst [vmem:[#allocation2 + $0x10] sm:$0xff] %v218
    %269 = vst [vmem:[#allocation2 + $0x18] sm:$0xff] %v247
    %270 = vst [vmem:[#allocation2 + $0x20] sm:$0xff] %v162
    %271 = vst [vmem:[#allocation2 + $0x28] sm:$0xff] %v191
    %272 = vst [vmem:[#allocation2 + $0x30] sm:$0xff] %v220
    %273 = vst [vmem:[#allocation2 + $0x38] sm:$0xff] %v249
    %274 = vst [vmem:[#allocation2 + $0x40] sm:$0xff] %v165
    %275 = vst [vmem:[#allocation2 + $0x48] sm:$0xff] %v194
    %276 = vst [vmem:[#allocation2 + $0x50] sm:$0xff] %v223
    %277 = vst [vmem:[#allocation2 + $0x58] sm:$0xff] %v252
    %278 = vst [vmem:[#allocation2 + $0x60] sm:$0xff] %v167
    %279 = vst [vmem:[#allocation2 + $0x68] sm:$0xff] %v196
    %280 = vst [vmem:[#allocation2 + $0x70] sm:$0xff] %v225
    %281 = vst [vmem:[#allocation2 + $0x78] sm:$0xff] %v254
    %282 = vst [vmem:[#allocation2 + $0x80] sm:$0xff] %v170
    %283 = vst [vmem:[#allocation2 + $0x88] sm:$0xff] %v199
    %284 = vst [vmem:[#allocation2 + $0x90] sm:$0xff] %v228
    %285 = vst [vmem:[#allocation2 + $0x98] sm:$0xff] %v257
    %286 = vst [vmem:[#allocation2 + $0xa0] sm:$0xff] %v172
    %287 = vst [vmem:[#allocation2 + $0xa8] sm:$0xff] %v201
    %288 = vst [vmem:[#allocation2 + $0xb0] sm:$0xff] %v230
    %289 = vst [vmem:[#allocation2 + $0xb8] sm:$0xff] %v259
    %290 = vst [vmem:[#allocation2 + $0xc0] sm:$0xff] %v175
    %291 = vst [vmem:[#allocation2 + $0xc8] sm:$0xff] %v204
    %292 = vst [vmem:[#allocation2 + $0xd0] sm:$0xff] %v233
    %293 = vst [vmem:[#allocation2 + $0xd8] sm:$0xff] %v262
    %294 = vst [vmem:[#allocation2 + $0xe0] sm:$0xff] %v177
    %295 = vst [vmem:[#allocation2 + $0xe8] sm:$0xff] %v206
    %296 = vst [vmem:[#allocation2 + $0xf0] sm:$0xff] %v235
    %297 = vst [vmem:[#allocation2 + $0xf8] sm:$0xff] %v264
    %v298 = vld [vmem:[#allocation6] sm:$0xff]
    %v299 = vld [vmem:[#allocation6 + $0x8] sm:$0xff]
    %v300 = vld [vmem:[#allocation6 + $0x10] sm:$0xff]
    %v301 = vld [vmem:[#allocation6 + $0x18] sm:$0xff]
    %v302 = vld [vmem:[#allocation6 + $0x20] sm:$0xff]
    %v303 = vld [vmem:[#allocation6 + $0x28] sm:$0xff]
    %v304 = vld [vmem:[#allocation6 + $0x30] sm:$0xff]
    %v305 = vld [vmem:[#allocation6 + $0x38] sm:$0xff]
    %v306 = vld [vmem:[#allocation6 + $0x40] sm:$0xff]
    %v307 = vld [vmem:[#allocation6 + $0x48] sm:$0xff]
    %v308 = vld [vmem:[#allocation6 + $0x50] sm:$0xff]
    %v309 = vld [vmem:[#allocation6 + $0x58] sm:$0xff]
    %v310 = vld [vmem:[#allocation6 + $0x60] sm:$0xff]
    %v311 = vld [vmem:[#allocation6 + $0x68] sm:$0xff]
    %v312 = vld [vmem:[#allocation6 + $0x70] sm:$0xff]
    %v313 = vld [vmem:[#allocation6 + $0x78] sm:$0xff]
    %v314 = vld [vmem:[#allocation6 + $0x80] sm:$0xff]
    %v315 = vld [vmem:[#allocation6 + $0x88] sm:$0xff]
    %v316 = vld [vmem:[#allocation6 + $0x90] sm:$0xff]
    %v317 = vld [vmem:[#allocation6 + $0x98] sm:$0xff]
    %v318 = vld [vmem:[#allocation6 + $0xa0] sm:$0xff]
    %v319 = vld [vmem:[#allocation6 + $0xa8] sm:$0xff]
    %v320 = vld [vmem:[#allocation6 + $0xb0] sm:$0xff]
    %v321 = vld [vmem:[#allocation6 + $0xb8] sm:$0xff]
    %v322 = vld [vmem:[#allocation6 + $0xc0] sm:$0xff]
    %v323 = vld [vmem:[#allocation6 + $0xc8] sm:$0xff]
    %v324 = vld [vmem:[#allocation6 + $0xd0] sm:$0xff]
    %v325 = vld [vmem:[#allocation6 + $0xd8] sm:$0xff]
    %v326 = vld [vmem:[#allocation6 + $0xe0] sm:$0xff]
    %v327 = vld [vmem:[#allocation6 + $0xe8] sm:$0xff]
    %v328 = vld [vmem:[#allocation6 + $0xf0] sm:$0xff]
    %v329 = vld [vmem:[#allocation6 + $0xf8] sm:$0xff]
    %v330 = vld [vmem:[#allocation2] sm:$0xff]
    %v331 = vld [vmem:[#allocation2 + $0x8] sm:$0xff]
    %v332 = vld [vmem:[#allocation2 + $0x10] sm:$0xff]
    %v333 = vld [vmem:[#allocation2 + $0x18] sm:$0xff]
    %v366 = vunpack.c.l.b16 %v298
    %v367 = vunpack.c.h.b16 %v298
    %v368 = vunpack.c.l.b16 %v299
    %v369 = vunpack.c.h.b16 %v299
    %v370 = vunpack.c.l.b16 %v300
    %v371 = vunpack.c.h.b16 %v300
    %v372 = vunpack.c.l.b16 %v301
    %v373 = vunpack.c.h.b16 %v301
    %v374 = vunpack.c.l.b16 %v302
    %v375 = vunpack.c.h.b16 %v302
    %v376 = vunpack.c.l.b16 %v303
    %v377 = vunpack.c.h.b16 %v303
    %v378 = vunpack.c.l.b16 %v304
    %v379 = vunpack.c.h.b16 %v304
    %v380 = vunpack.c.l.b16 %v305
    %v381 = vunpack.c.h.b16 %v305
    %v382 = vunpack.c.l.b16 %v306
    %v383 = vunpack.c.h.b16 %v306
    %v384 = vunpack.c.l.b16 %v307
    %v385 = vunpack.c.h.b16 %v307
    %v386 = vunpack.c.l.b16 %v308
    %v387 = vunpack.c.h.b16 %v308
    %v388 = vunpack.c.l.b16 %v309
    %v389 = vunpack.c.h.b16 %v309
    %v390 = vunpack.c.l.b16 %v310
    %v391 = vunpack.c.h.b16 %v310
    %v392 = vunpack.c.l.b16 %v311
    %v393 = vunpack.c.h.b16 %v311
    %v394 = vunpack.c.l.b16 %v312
    %v395 = vunpack.c.h.b16 %v312
    %v396 = vunpack.c.l.b16 %v313
    %v397 = vunpack.c.h.b16 %v313
    %v398 = vunpack.c.l.b16 %v314
    %v399 = vunpack.c.h.b16 %v314
    %v400 = vunpack.c.l.b16 %v315
    %v401 = vunpack.c.h.b16 %v315
    %v402 = vunpack.c.l.b16 %v316
    %v403 = vunpack.c.h.b16 %v316
    %v404 = vunpack.c.l.b16 %v317
    %v405 = vunpack.c.h.b16 %v317
    %v406 = vunpack.c.l.b16 %v318
    %v407 = vunpack.c.h.b16 %v318
    %v408 = vunpack.c.l.b16 %v319
    %v409 = vunpack.c.h.b16 %v319
    %v410 = vunpack.c.l.b16 %v320
    %v411 = vunpack.c.h.b16 %v320
    %v412 = vunpack.c.l.b16 %v321
    %v413 = vunpack.c.h.b16 %v321
    %v414 = vunpack.c.l.b16 %v322
    %v415 = vunpack.c.h.b16 %v322
    %v416 = vunpack.c.l.b16 %v323
    %v417 = vunpack.c.h.b16 %v323
    %v418 = vunpack.c.l.b16 %v324
    %v419 = vunpack.c.h.b16 %v324
    %v420 = vunpack.c.l.b16 %v325
    %v421 = vunpack.c.h.b16 %v325
    %v422 = vunpack.c.l.b16 %v326
    %v423 = vunpack.c.h.b16 %v326
    %v424 = vunpack.c.l.b16 %v327
    %v425 = vunpack.c.h.b16 %v327
    %v426 = vunpack.c.l.b16 %v328
    %v427 = vunpack.c.h.b16 %v328
    %v428 = vunpack.c.l.b16 %v329
    %v429 = vunpack.c.h.b16 %v329
    %v430 = vpack.c.b16 %v370, %v366
    %v431 = vpack.c.b16 %v371, %v367
    %v432 = vpack.c.b16 %v372, %v368
    %v433 = vpack.c.b16 %v373, %v369
    %v434 = vpack.c.b16 %v378, %v374
    %v435 = vpack.c.b16 %v379, %v375
    %v436 = vpack.c.b16 %v380, %v376
    %v437 = vpack.c.b16 %v381, %v377
    %v438 = vpack.c.b16 %v386, %v382
    %v439 = vpack.c.b16 %v387, %v383
    %v440 = vpack.c.b16 %v388, %v384
    %v441 = vpack.c.b16 %v389, %v385
    %v442 = vpack.c.b16 %v394, %v390
    %v443 = vpack.c.b16 %v395, %v391
    %v444 = vpack.c.b16 %v396, %v392
    %v445 = vpack.c.b16 %v397, %v393
    %v446 = vpack.c.b16 %v402, %v398
    %v447 = vpack.c.b16 %v403, %v399
    %v448 = vpack.c.b16 %v404, %v400
    %v449 = vpack.c.b16 %v405, %v401
    %v450 = vpack.c.b16 %v410, %v406
    %v451 = vpack.c.b16 %v411, %v407
    %v452 = vpack.c.b16 %v412, %v408
    %v453 = vpack.c.b16 %v413, %v409
    %v454 = vpack.c.b16 %v418, %v414
    %v455 = vpack.c.b16 %v419, %v415
    %v456 = vpack.c.b16 %v420, %v416
    %v457 = vpack.c.b16 %v421, %v417
    %v458 = vpack.c.b16 %v426, %v422
    %v459 = vpack.c.b16 %v427, %v423
    %v460 = vpack.c.b16 %v428, %v424
    %v461 = vpack.c.b16 %v429, %v425
    %494 = vmatpush.bf16.msra.mxu0 %v458
    %495 = vmatpush.bf16.msra.mxu0 %v454
    %496 = vmatpush.bf16.msra.mxu0 %v450
    %497 = vmatpush.bf16.msra.mxu0 %v446
    %498 = vmatpush.bf16.msra.mxu0 %v442
    %499 = vmatpush.bf16.msra.mxu0 %v438
    %500 = vmatpush.bf16.msra.mxu0 %v434
    %501 = vmatpush.bf16.msra.mxu0 %v430
    %502 = vmatmul.bf16.gmra.mxu0 0
    %v503 = vpop.f32.mrf.mxu0
    %v504 = vadd.f32 0.0, %v503
    %v505 = vpop.f32.mrf.mxu0
    %506 = vdwg.mxu0
    %507 = vmatpush.bf16.msra.mxu0 %v459
    %508 = vmatpush.bf16.msra.mxu0 %v455
    %509 = vmatpush.bf16.msra.mxu0 %v451
    %510 = vmatpush.bf16.msra.mxu0 %v447
    %511 = vmatpush.bf16.msra.mxu0 %v443
    %512 = vmatpush.bf16.msra.mxu0 %v439
    %513 = vmatpush.bf16.msra.mxu0 %v435
    %514 = vmatpush.bf16.msra.mxu0 %v431
    %515 = vmatmul.bf16.gmra.mxu0 0
    %v516 = vpop.f32.mrf.mxu0
    %v517 = vadd.f32 0.0, %v516
    %v518 = vpop.f32.mrf.mxu0
    %519 = vdwg.mxu0
    %520 = vmatpush.bf16.msra.mxu0 %v460
    %521 = vmatpush.bf16.msra.mxu0 %v456
    %522 = vmatpush.bf16.msra.mxu0 %v452
    %523 = vmatpush.bf16.msra.mxu0 %v448
    %524 = vmatpush.bf16.msra.mxu0 %v444
    %525 = vmatpush.bf16.msra.mxu0 %v440
    %526 = vmatpush.bf16.msra.mxu0 %v436
    %527 = vmatpush.bf16.msra.mxu0 %v432
    %528 = vmatmul.bf16.gmra.mxu0 0
    %v529 = vpop.f32.mrf.mxu0
    %v530 = vadd.f32 0.0, %v529
    %v531 = vpop.f32.mrf.mxu0
    %532 = vdwg.mxu0
    %533 = vmatpush.bf16.msra.mxu0 %v461
    %534 = vmatpush.bf16.msra.mxu0 %v457
    %535 = vmatpush.bf16.msra.mxu0 %v453
    %536 = vmatpush.bf16.msra.mxu0 %v449
    %537 = vmatpush.bf16.msra.mxu0 %v445
    %538 = vmatpush.bf16.msra.mxu0 %v441
    %539 = vmatpush.bf16.msra.mxu0 %v437
    %540 = vmatpush.bf16.msra.mxu0 %v433
    %541 = vmatmul.bf16.gmra.mxu0 0
    %v542 = vpop.f32.mrf.mxu0
    %v543 = vadd.f32 0.0, %v542
    %v544 = vpop.f32.mrf.mxu0
    %545 = vdwg.mxu0
    %v546 = vadd.f32 %v330, %v504
    %v547 = vadd.f32 %v331, %v517
    %v548 = vadd.f32 %v332, %v530
    %v549 = vadd.f32 %v333, %v543
    %v550 = vxor.u32 %v546, 2147483648
    %v551 = vxor.u32 %v547, 2147483648
    %v552 = vxor.u32 %v548, 2147483648
    %v553 = vmul.f32 %v550, 1.442695
    %v554 = vpow.pop %v553
    %v555 = vmul.f32 %v551, 1.442695
    %v556 = vpow.pop %v555
    %v557 = vmul.f32 %v552, 1.442695
    %v558 = vpow.pop %v557
    %v559 = vadd.f32 %v554, 1.0
    %v560 = vadd.f32 %v556, 1.0
    %v561 = vadd.f32 %v558, 1.0
    %v562 = vrcp.pop %v559
    %v563 = vmul.f32 %v559, %v562
    %v564 = vsub.f32 1.0, %v563
    %v565 = vmul.f32 %v562, %v564
    %v566 = vadd.f32 %v562, %v565
    %vm567 = vweird.f32 %v559
    %vm568 = vweird.f32 %v562
    %vm569 = vmor %vm567, %vm568
    %v570 = vsel %vm569, %v562, %v566
    %v571 = vand.u32 2147483647, %v559
    %vm572 = vcmp.eq.f32.partialorder %v571, 8.507059e+37
    %v573 = vand.u32 %v559, 2147483648
    %v574 = vor.u32 1.1754944e-38, %v573
    %v575 = vsel %vm572, %v574, %v570
    %v576 = vmul.f32 1.0, %v575
    %v577 = vrcp.pop %v560
    %v578 = vmul.f32 %v560, %v577
    %v579 = vsub.f32 1.0, %v578
    %v580 = vmul.f32 %v577, %v579
    %v581 = vadd.f32 %v577, %v580
    %vm582 = vweird.f32 %v560
    %vm583 = vweird.f32 %v577
    %vm584 = vmor %vm582, %vm583
    %v585 = vsel %vm584, %v577, %v581
    %v586 = vand.u32 2147483647, %v560
    %vm587 = vcmp.eq.f32.partialorder %v586, 8.507059e+37
    %v588 = vand.u32 %v560, 2147483648
    %v589 = vor.u32 1.1754944e-38, %v588
    %v590 = vsel %vm587, %v589, %v585
    %v591 = vmul.f32 1.0, %v590
    %v592 = vrcp.pop %v561
    %v593 = vmul.f32 %v561, %v592
    %v594 = vsub.f32 1.0, %v593
    %v595 = vmul.f32 %v592, %v594
    %v596 = vadd.f32 %v592, %v595
    %vm597 = vweird.f32 %v561
    %vm598 = vweird.f32 %v592
    %vm599 = vmor %vm597, %vm598
    %v600 = vsel %vm599, %v592, %v596
    %v601 = vand.u32 2147483647, %v561
    %vm602 = vcmp.eq.f32.partialorder %v601, 8.507059e+37
    %v603 = vand.u32 %v561, 2147483648
    %v604 = vor.u32 1.1754944e-38, %v603
    %v605 = vsel %vm602, %v604, %v600
    %v606 = vmul.f32 1.0, %v605
    %v607 = vtanh.pop %v549
    %v608 = vmul.f32 %v591, 0.0
    %v609 = vmul.f32 %v576, %v607
    %v610 = vadd.f32 %v608, %v609
    %v611 = vtanh.pop %v610
    %v612 = vmul.f32 %v606, %v611
    %613 = vst [vmem:[#allocation8] sm:$0xff] %v612
    %v614 = vld [vmem:[#allocation2 + $0x20] sm:$0xff]
    %v615 = vld [vmem:[#allocation2 + $0x28] sm:$0xff]
    %v616 = vld [vmem:[#allocation2 + $0x30] sm:$0xff]
    %v617 = vld [vmem:[#allocation2 + $0x38] sm:$0xff]
    %v618 = vpack.c.bf16 %v612, %v612
    %619 = vmatpush.bf16.msra.mxu0 %v458
    %620 = vmatpush.bf16.msra.mxu0 %v454
    %621 = vmatpush.bf16.msra.mxu0 %v450
    %622 = vmatpush.bf16.msra.mxu0 %v446
    %623 = vmatpush.bf16.msra.mxu0 %v442
    %624 = vmatpush.bf16.msra.mxu0 %v438
    %625 = vmatpush.bf16.msra.mxu0 %v434
    %626 = vmatpush.bf16.msra.mxu0 %v430
    %627 = vmatmul.bf16.gmra.mxu0 %v618
    %v628 = vpop.f32.mrf.mxu0
    %v629 = vadd.f32 0.0, %v628
    %v630 = vpop.f32.mrf.mxu0
    %631 = vdwg.mxu0
    %632 = vmatpush.bf16.msra.mxu0 %v459
    %633 = vmatpush.bf16.msra.mxu0 %v455
    %634 = vmatpush.bf16.msra.mxu0 %v451
    %635 = vmatpush.bf16.msra.mxu0 %v447
    %636 = vmatpush.bf16.msra.mxu0 %v443
    %637 = vmatpush.bf16.msra.mxu0 %v439
    %638 = vmatpush.bf16.msra.mxu0 %v435
    %639 = vmatpush.bf16.msra.mxu0 %v431
    %640 = vmatmul.bf16.gmra.mxu0 %v618
    %v641 = vpop.f32.mrf.mxu0
    %v642 = vadd.f32 0.0, %v641
    %v643 = vpop.f32.mrf.mxu0
    %644 = vdwg.mxu0
    %645 = vmatpush.bf16.msra.mxu0 %v460
    %646 = vmatpush.bf16.msra.mxu0 %v456
    %647 = vmatpush.bf16.msra.mxu0 %v452
    %648 = vmatpush.bf16.msra.mxu0 %v448
    %649 = vmatpush.bf16.msra.mxu0 %v444
    %650 = vmatpush.bf16.msra.mxu0 %v440
    %651 = vmatpush.bf16.msra.mxu0 %v436
    %652 = vmatpush.bf16.msra.mxu0 %v432
    %653 = vmatmul.bf16.gmra.mxu0 %v618
    %v654 = vpop.f32.mrf.mxu0
    %v655 = vadd.f32 0.0, %v654
    %v656 = vpop.f32.mrf.mxu0
    %657 = vdwg.mxu0
    %658 = vmatpush.bf16.msra.mxu0 %v461
    %659 = vmatpush.bf16.msra.mxu0 %v457
    %660 = vmatpush.bf16.msra.mxu0 %v453
    %661 = vmatpush.bf16.msra.mxu0 %v449
    %662 = vmatpush.bf16.msra.mxu0 %v445
    %663 = vmatpush.bf16.msra.mxu0 %v441
    %664 = vmatpush.bf16.msra.mxu0 %v437
    %665 = vmatpush.bf16.msra.mxu0 %v433
    %666 = vmatmul.bf16.gmra.mxu0 %v618
    %v667 = vpop.f32.mrf.mxu0
    %v668 = vadd.f32 0.0, %v667
    %v669 = vpop.f32.mrf.mxu0
    %670 = vdwg.mxu0
    %v671 = vadd.f32 %v614, %v629
    %v672 = vadd.f32 %v615, %v642
    %v673 = vadd.f32 %v616, %v655
    %v674 = vadd.f32 %v617, %v668
    %v675 = vxor.u32 %v671, 2147483648
    %v676 = vxor.u32 %v672, 2147483648
    %v677 = vxor.u32 %v673, 2147483648
    %v678 = vmul.f32 %v675, 1.442695
    %v679 = vpow.pop %v678
    %v680 = vmul.f32 %v676, 1.442695
    %v681 = vpow.pop %v680
    %v682 = vmul.f32 %v677, 1.442695
    %v683 = vpow.pop %v682
    %v684 = vadd.f32 %v679, 1.0
    %v685 = vadd.f32 %v681, 1.0
    %v686 = vadd.f32 %v683, 1.0
    %v687 = vrcp.pop %v684
    %v688 = vmul.f32 %v684, %v687
    %v689 = vsub.f32 1.0, %v688
    %v690 = vmul.f32 %v687, %v689
    %v691 = vadd.f32 %v687, %v690
    %vm692 = vweird.f32 %v684
    %vm693 = vweird.f32 %v687
    %vm694 = vmor %vm692, %vm693
    %v695 = vsel %vm694, %v687, %v691
    %v696 = vand.u32 2147483647, %v684
    %vm697 = vcmp.eq.f32.partialorder %v696, 8.507059e+37
    %v698 = vand.u32 %v684, 2147483648
    %v699 = vor.u32 1.1754944e-38, %v698
    %v700 = vsel %vm697, %v699, %v695
    %v701 = vmul.f32 1.0, %v700
    %v702 = vrcp.pop %v685
    %v703 = vmul.f32 %v685, %v702
    %v704 = vsub.f32 1.0, %v703
    %v705 = vmul.f32 %v702, %v704
    %v706 = vadd.f32 %v702, %v705
    %vm707 = vweird.f32 %v685
    %vm708 = vweird.f32 %v702
    %vm709 = vmor %vm707, %vm708
    %v710 = vsel %vm709, %v702, %v706
    %v711 = vand.u32 2147483647, %v685
    %vm712 = vcmp.eq.f32.partialorder %v711, 8.507059e+37
    %v713 = vand.u32 %v685, 2147483648
    %v714 = vor.u32 1.1754944e-38, %v713
    %v715 = vsel %vm712, %v714, %v710
    %v716 = vmul.f32 1.0, %v715
    %v717 = vrcp.pop %v686
    %v718 = vmul.f32 %v686, %v717
    %v719 = vsub.f32 1.0, %v718
    %v720 = vmul.f32 %v717, %v719
    %v721 = vadd.f32 %v717, %v720
    %vm722 = vweird.f32 %v686
    %vm723 = vweird.f32 %v717
    %vm724 = vmor %vm722, %vm723
    %v725 = vsel %vm724, %v717, %v721
    %v726 = vand.u32 2147483647, %v686
    %vm727 = vcmp.eq.f32.partialorder %v726, 8.507059e+37
    %v728 = vand.u32 %v686, 2147483648
    %v729 = vor.u32 1.1754944e-38, %v728
    %v730 = vsel %vm727, %v729, %v725
    %v731 = vmul.f32 1.0, %v730
    %v732 = vtanh.pop %v674
    %v733 = vmul.f32 %v716, %v610
    %v734 = vmul.f32 %v701, %v732
    %v735 = vadd.f32 %v733, %v734
    %v736 = vtanh.pop %v735
    %v737 = vmul.f32 %v731, %v736
    %738 = vst [vmem:[#allocation8 + $0x8] sm:$0xff] %v737
    %v739 = vld [vmem:[#allocation2 + $0x40] sm:$0xff]
    %v740 = vld [vmem:[#allocation2 + $0x48] sm:$0xff]
    %v741 = vld [vmem:[#allocation2 + $0x50] sm:$0xff]
    %v742 = vld [vmem:[#allocation2 + $0x58] sm:$0xff]
    %v743 = vpack.c.bf16 %v737, %v737
    %744 = vmatpush.bf16.msra.mxu0 %v458
    %745 = vmatpush.bf16.msra.mxu0 %v454
    %746 = vmatpush.bf16.msra.mxu0 %v450
    %747 = vmatpush.bf16.msra.mxu0 %v446
    %748 = vmatpush.bf16.msra.mxu0 %v442
    %749 = vmatpush.bf16.msra.mxu0 %v438
    %750 = vmatpush.bf16.msra.mxu0 %v434
    %751 = vmatpush.bf16.msra.mxu0 %v430
    %752 = vmatmul.bf16.gmra.mxu0 %v743
    %v753 = vpop.f32.mrf.mxu0
    %v754 = vadd.f32 0.0, %v753
    %v755 = vpop.f32.mrf.mxu0
    %756 = vdwg.mxu0
    %757 = vmatpush.bf16.msra.mxu0 %v459
    %758 = vmatpush.bf16.msra.mxu0 %v455
    %759 = vmatpush.bf16.msra.mxu0 %v451
    %760 = vmatpush.bf16.msra.mxu0 %v447
    %761 = vmatpush.bf16.msra.mxu0 %v443
    %762 = vmatpush.bf16.msra.mxu0 %v439
    %763 = vmatpush.bf16.msra.mxu0 %v435
    %764 = vmatpush.bf16.msra.mxu0 %v431
    %765 = vmatmul.bf16.gmra.mxu0 %v743
    %v766 = vpop.f32.mrf.mxu0
    %v767 = vadd.f32 0.0, %v766
    %v768 = vpop.f32.mrf.mxu0
    %769 = vdwg.mxu0
    %770 = vmatpush.bf16.msra.mxu0 %v460
    %771 = vmatpush.bf16.msra.mxu0 %v456
    %772 = vmatpush.bf16.msra.mxu0 %v452
    %773 = vmatpush.bf16.msra.mxu0 %v448
    %774 = vmatpush.bf16.msra.mxu0 %v444
    %775 = vmatpush.bf16.msra.mxu0 %v440
    %776 = vmatpush.bf16.msra.mxu0 %v436
    %777 = vmatpush.bf16.msra.mxu0 %v432
    %778 = vmatmul.bf16.gmra.mxu0 %v743
    %v779 = vpop.f32.mrf.mxu0
    %v780 = vadd.f32 0.0, %v779
    %v781 = vpop.f32.mrf.mxu0
    %782 = vdwg.mxu0
    %783 = vmatpush.bf16.msra.mxu0 %v461
    %784 = vmatpush.bf16.msra.mxu0 %v457
    %785 = vmatpush.bf16.msra.mxu0 %v453
    %786 = vmatpush.bf16.msra.mxu0 %v449
    %787 = vmatpush.bf16.msra.mxu0 %v445
    %788 = vmatpush.bf16.msra.mxu0 %v441
    %789 = vmatpush.bf16.msra.mxu0 %v437
    %790 = vmatpush.bf16.msra.mxu0 %v433
    %791 = vmatmul.bf16.gmra.mxu0 %v743
    %v792 = vpop.f32.mrf.mxu0
    %v793 = vadd.f32 0.0, %v792
    %v794 = vpop.f32.mrf.mxu0
    %795 = vdwg.mxu0
    %v796 = vadd.f32 %v739, %v754
    %v797 = vadd.f32 %v740, %v767
    %v798 = vadd.f32 %v741, %v780
    %v799 = vadd.f32 %v742, %v793
    %v800 = vxor.u32 %v796, 2147483648
    %v801 = vxor.u32 %v797, 2147483648
    %v802 = vxor.u32 %v798, 2147483648
    %v803 = vmul.f32 %v800, 1.442695
    %v804 = vpow.pop %v803
    %v805 = vmul.f32 %v801, 1.442695
    %v806 = vpow.pop %v805
    %v807 = vmul.f32 %v802, 1.442695
    %v808 = vpow.pop %v807
    %v809 = vadd.f32 %v804, 1.0
    %v810 = vadd.f32 %v806, 1.0
    %v811 = vadd.f32 %v808, 1.0
    %v812 = vrcp.pop %v809
    %v813 = vmul.f32 %v809, %v812
    %v814 = vsub.f32 1.0, %v813
    %v815 = vmul.f32 %v812, %v814
    %v816 = vadd.f32 %v812, %v815
    %vm817 = vweird.f32 %v809
    %vm818 = vweird.f32 %v812
    %vm819 = vmor %vm817, %vm818
    %v820 = vsel %vm819, %v812, %v816
    %v821 = vand.u32 2147483647, %v809
    %vm822 = vcmp.eq.f32.partialorder %v821, 8.507059e+37
    %v823 = vand.u32 %v809, 2147483648
    %v824 = vor.u32 1.1754944e-38, %v823
    %v825 = vsel %vm822, %v824, %v820
    %v826 = vmul.f32 1.0, %v825
    %v827 = vrcp.pop %v810
    %v828 = vmul.f32 %v810, %v827
    %v829 = vsub.f32 1.0, %v828
    %v830 = vmul.f32 %v827, %v829
    %v831 = vadd.f32 %v827, %v830
    %vm832 = vweird.f32 %v810
    %vm833 = vweird.f32 %v827
    %vm834 = vmor %vm832, %vm833
    %v835 = vsel %vm834, %v827, %v831
    %v836 = vand.u32 2147483647, %v810
    %vm837 = vcmp.eq.f32.partialorder %v836, 8.507059e+37
    %v838 = vand.u32 %v810, 2147483648
    %v839 = vor.u32 1.1754944e-38, %v838
    %v840 = vsel %vm837, %v839, %v835
    %v841 = vmul.f32 1.0, %v840
    %v842 = vrcp.pop %v811
    %v843 = vmul.f32 %v811, %v842
    %v844 = vsub.f32 1.0, %v843
    %v845 = vmul.f32 %v842, %v844
    %v846 = vadd.f32 %v842, %v845
    %vm847 = vweird.f32 %v811
    %vm848 = vweird.f32 %v842
    %vm849 = vmor %vm847, %vm848
    %v850 = vsel %vm849, %v842, %v846
    %v851 = vand.u32 2147483647, %v811
    %vm852 = vcmp.eq.f32.partialorder %v851, 8.507059e+37
    %v853 = vand.u32 %v811, 2147483648
    %v854 = vor.u32 1.1754944e-38, %v853
    %v855 = vsel %vm852, %v854, %v850
    %v856 = vmul.f32 1.0, %v855
    %v857 = vtanh.pop %v799
    %v858 = vmul.f32 %v841, %v735
    %v859 = vmul.f32 %v826, %v857
    %v860 = vadd.f32 %v858, %v859
    %v861 = vtanh.pop %v860
    %v862 = vmul.f32 %v856, %v861
    %863 = vst [vmem:[#allocation8 + $0x10] sm:$0xff] %v862
    %v864 = vld [vmem:[#allocation2 + $0x60] sm:$0xff]
    %v865 = vld [vmem:[#allocation2 + $0x68] sm:$0xff]
    %v866 = vld [vmem:[#allocation2 + $0x70] sm:$0xff]
    %v867 = vld [vmem:[#allocation2 + $0x78] sm:$0xff]
    %v868 = vpack.c.bf16 %v862, %v862
    %869 = vmatpush.bf16.msra.mxu0 %v458
    %870 = vmatpush.bf16.msra.mxu0 %v454
    %871 = vmatpush.bf16.msra.mxu0 %v450
    %872 = vmatpush.bf16.msra.mxu0 %v446
    %873 = vmatpush.bf16.msra.mxu0 %v442
    %874 = vmatpush.bf16.msra.mxu0 %v438
    %875 = vmatpush.bf16.msra.mxu0 %v434
    %876 = vmatpush.bf16.msra.mxu0 %v430
    %877 = vmatmul.bf16.gmra.mxu0 %v868
    %v878 = vpop.f32.mrf.mxu0
    %v879 = vadd.f32 0.0, %v878
    %v880 = vpop.f32.mrf.mxu0
    %881 = vdwg.mxu0
    %882 = vmatpush.bf16.msra.mxu0 %v459
    %883 = vmatpush.bf16.msra.mxu0 %v455
    %884 = vmatpush.bf16.msra.mxu0 %v451
    %885 = vmatpush.bf16.msra.mxu0 %v447
    %886 = vmatpush.bf16.msra.mxu0 %v443
    %887 = vmatpush.bf16.msra.mxu0 %v439
    %888 = vmatpush.bf16.msra.mxu0 %v435
    %889 = vmatpush.bf16.msra.mxu0 %v431
    %890 = vmatmul.bf16.gmra.mxu0 %v868
    %v891 = vpop.f32.mrf.mxu0
    %v892 = vadd.f32 0.0, %v891
    %v893 = vpop.f32.mrf.mxu0
    %894 = vdwg.mxu0
    %895 = vmatpush.bf16.msra.mxu0 %v460
    %896 = vmatpush.bf16.msra.mxu0 %v456
    %897 = vmatpush.bf16.msra.mxu0 %v452
    %898 = vmatpush.bf16.msra.mxu0 %v448
    %899 = vmatpush.bf16.msra.mxu0 %v444
    %900 = vmatpush.bf16.msra.mxu0 %v440
    %901 = vmatpush.bf16.msra.mxu0 %v436
    %902 = vmatpush.bf16.msra.mxu0 %v432
    %903 = vmatmul.bf16.gmra.mxu0 %v868
    %v904 = vpop.f32.mrf.mxu0
    %v905 = vadd.f32 0.0, %v904
    %v906 = vpop.f32.mrf.mxu0
    %907 = vdwg.mxu0
    %908 = vmatpush.bf16.msra.mxu0 %v461
    %909 = vmatpush.bf16.msra.mxu0 %v457
    %910 = vmatpush.bf16.msra.mxu0 %v453
    %911 = vmatpush.bf16.msra.mxu0 %v449
    %912 = vmatpush.bf16.msra.mxu0 %v445
    %913 = vmatpush.bf16.msra.mxu0 %v441
    %914 = vmatpush.bf16.msra.mxu0 %v437
    %915 = vmatpush.bf16.msra.mxu0 %v433
    %916 = vmatmul.bf16.gmra.mxu0 %v868
    %v917 = vpop.f32.mrf.mxu0
    %v918 = vadd.f32 0.0, %v917
    %v919 = vpop.f32.mrf.mxu0
    %920 = vdwg.mxu0
    %v921 = vadd.f32 %v864, %v879
    %v922 = vadd.f32 %v865, %v892
    %v923 = vadd.f32 %v866, %v905
    %v924 = vadd.f32 %v867, %v918
    %v925 = vxor.u32 %v921, 2147483648
    %v926 = vxor.u32 %v922, 2147483648
    %v927 = vxor.u32 %v923, 2147483648
    %v928 = vmul.f32 %v925, 1.442695
    %v929 = vpow.pop %v928
    %v930 = vmul.f32 %v926, 1.442695
    %v931 = vpow.pop %v930
    %v932 = vmul.f32 %v927, 1.442695
    %v933 = vpow.pop %v932
    %v934 = vadd.f32 %v929, 1.0
    %v935 = vadd.f32 %v931, 1.0
    %v936 = vadd.f32 %v933, 1.0
    %v937 = vrcp.pop %v934
    %v938 = vmul.f32 %v934, %v937
    %v939 = vsub.f32 1.0, %v938
    %v940 = vmul.f32 %v937, %v939
    %v941 = vadd.f32 %v937, %v940
    %vm942 = vweird.f32 %v934
    %vm943 = vweird.f32 %v937
    %vm944 = vmor %vm942, %vm943
    %v945 = vsel %vm944, %v937, %v941
    %v946 = vand.u32 2147483647, %v934
    %vm947 = vcmp.eq.f32.partialorder %v946, 8.507059e+37
    %v948 = vand.u32 %v934, 2147483648
    %v949 = vor.u32 1.1754944e-38, %v948
    %v950 = vsel %vm947, %v949, %v945
    %v951 = vmul.f32 1.0, %v950
    %v952 = vrcp.pop %v935
    %v953 = vmul.f32 %v935, %v952
    %v954 = vsub.f32 1.0, %v953
    %v955 = vmul.f32 %v952, %v954
    %v956 = vadd.f32 %v952, %v955
    %vm957 = vweird.f32 %v935
    %vm958 = vweird.f32 %v952
    %vm959 = vmor %vm957, %vm958
    %v960 = vsel %vm959, %v952, %v956
    %v961 = vand.u32 2147483647, %v935
    %vm962 = vcmp.eq.f32.partialorder %v961, 8.507059e+37
    %v963 = vand.u32 %v935, 2147483648
    %v964 = vor.u32 1.1754944e-38, %v963
    %v965 = vsel %vm962, %v964, %v960
    %v966 = vmul.f32 1.0, %v965
    %v967 = vrcp.pop %v936
    %v968 = vmul.f32 %v936, %v967
    %v969 = vsub.f32 1.0, %v968
    %v970 = vmul.f32 %v967, %v969
    %v971 = vadd.f32 %v967, %v970
    %vm972 = vweird.f32 %v936
    %vm973 = vweird.f32 %v967
    %vm974 = vmor %vm972, %vm973
    %v975 = vsel %vm974, %v967, %v971
    %v976 = vand.u32 2147483647, %v936
    %vm977 = vcmp.eq.f32.partialorder %v976, 8.507059e+37
    %v978 = vand.u32 %v936, 2147483648
    %v979 = vor.u32 1.1754944e-38, %v978
    %v980 = vsel %vm977, %v979, %v975
    %v981 = vmul.f32 1.0, %v980
    %v982 = vtanh.pop %v924
    %v983 = vmul.f32 %v966, %v860
    %v984 = vmul.f32 %v951, %v982
    %v985 = vadd.f32 %v983, %v984
    %v986 = vtanh.pop %v985
    %v987 = vmul.f32 %v981, %v986
    %988 = vst [vmem:[#allocation8 + $0x18] sm:$0xff] %v987
    %v989 = vld [vmem:[#allocation2 + $0x80] sm:$0xff]
    %v990 = vld [vmem:[#allocation2 + $0x88] sm:$0xff]
    %v991 = vld [vmem:[#allocation2 + $0x90] sm:$0xff]
    %v992 = vld [vmem:[#allocation2 + $0x98] sm:$0xff]
    %v993 = vpack.c.bf16 %v987, %v987
    %994 = vmatpush.bf16.msra.mxu0 %v458
    %995 = vmatpush.bf16.msra.mxu0 %v454
    %996 = vmatpush.bf16.msra.mxu0 %v450
    %997 = vmatpush.bf16.msra.mxu0 %v446
    %998 = vmatpush.bf16.msra.mxu0 %v442
    %999 = vmatpush.bf16.msra.mxu0 %v438
    %1000 = vmatpush.bf16.msra.mxu0 %v434
    %1001 = vmatpush.bf16.msra.mxu0 %v430
    %1002 = vmatmul.bf16.gmra.mxu0 %v993
    %v1003 = vpop.f32.mrf.mxu0
    %v1004 = vadd.f32 0.0, %v1003
    %v1005 = vpop.f32.mrf.mxu0
    %1006 = vdwg.mxu0
    %1007 = vmatpush.bf16.msra.mxu0 %v459
    %1008 = vmatpush.bf16.msra.mxu0 %v455
    %1009 = vmatpush.bf16.msra.mxu0 %v451
    %1010 = vmatpush.bf16.msra.mxu0 %v447
    %1011 = vmatpush.bf16.msra.mxu0 %v443
    %1012 = vmatpush.bf16.msra.mxu0 %v439
    %1013 = vmatpush.bf16.msra.mxu0 %v435
    %1014 = vmatpush.bf16.msra.mxu0 %v431
    %1015 = vmatmul.bf16.gmra.mxu0 %v993
    %v1016 = vpop.f32.mrf.mxu0
    %v1017 = vadd.f32 0.0, %v1016
    %v1018 = vpop.f32.mrf.mxu0
    %1019 = vdwg.mxu0
    %1020 = vmatpush.bf16.msra.mxu0 %v460
    %1021 = vmatpush.bf16.msra.mxu0 %v456
    %1022 = vmatpush.bf16.msra.mxu0 %v452
    %1023 = vmatpush.bf16.msra.mxu0 %v448
    %1024 = vmatpush.bf16.msra.mxu0 %v444
    %1025 = vmatpush.bf16.msra.mxu0 %v440
    %1026 = vmatpush.bf16.msra.mxu0 %v436
    %1027 = vmatpush.bf16.msra.mxu0 %v432
    %1028 = vmatmul.bf16.gmra.mxu0 %v993
    %v1029 = vpop.f32.mrf.mxu0
    %v1030 = vadd.f32 0.0, %v1029
    %v1031 = vpop.f32.mrf.mxu0
    %1032 = vdwg.mxu0
    %1033 = vmatpush.bf16.msra.mxu0 %v461
    %1034 = vmatpush.bf16.msra.mxu0 %v457
    %1035 = vmatpush.bf16.msra.mxu0 %v453
    %1036 = vmatpush.bf16.msra.mxu0 %v449
    %1037 = vmatpush.bf16.msra.mxu0 %v445
    %1038 = vmatpush.bf16.msra.mxu0 %v441
    %1039 = vmatpush.bf16.msra.mxu0 %v437
    %1040 = vmatpush.bf16.msra.mxu0 %v433
    %1041 = vmatmul.bf16.gmra.mxu0 %v993
    %v1042 = vpop.f32.mrf.mxu0
    %v1043 = vadd.f32 0.0, %v1042
    %v1044 = vpop.f32.mrf.mxu0
    %1045 = vdwg.mxu0
    %v1046 = vadd.f32 %v989, %v1004
    %v1047 = vadd.f32 %v990, %v1017
    %v1048 = vadd.f32 %v991, %v1030
    %v1049 = vadd.f32 %v992, %v1043
    %v1050 = vxor.u32 %v1046, 2147483648
    %v1051 = vxor.u32 %v1047, 2147483648
    %v1052 = vxor.u32 %v1048, 2147483648
    %v1053 = vmul.f32 %v1050, 1.442695
    %v1054 = vpow.pop %v1053
    %v1055 = vmul.f32 %v1051, 1.442695
    %v1056 = vpow.pop %v1055
    %v1057 = vmul.f32 %v1052, 1.442695
    %v1058 = vpow.pop %v1057
    %v1059 = vadd.f32 %v1054, 1.0
    %v1060 = vadd.f32 %v1056, 1.0
    %v1061 = vadd.f32 %v1058, 1.0
    %v1062 = vrcp.pop %v1059
    %v1063 = vmul.f32 %v1059, %v1062
    %v1064 = vsub.f32 1.0, %v1063
    %v1065 = vmul.f32 %v1062, %v1064
    %v1066 = vadd.f32 %v1062, %v1065
    %vm1067 = vweird.f32 %v1059
    %vm1068 = vweird.f32 %v1062
    %vm1069 = vmor %vm1067, %vm1068
    %v1070 = vsel %vm1069, %v1062, %v1066
    %v1071 = vand.u32 2147483647, %v1059
    %vm1072 = vcmp.eq.f32.partialorder %v1071, 8.507059e+37
    %v1073 = vand.u32 %v1059, 2147483648
    %v1074 = vor.u32 1.1754944e-38, %v1073
    %v1075 = vsel %vm1072, %v1074, %v1070
    %v1076 = vmul.f32 1.0, %v1075
    %v1077 = vrcp.pop %v1060
    %v1078 = vmul.f32 %v1060, %v1077
    %v1079 = vsub.f32 1.0, %v1078
    %v1080 = vmul.f32 %v1077, %v1079
    %v1081 = vadd.f32 %v1077, %v1080
    %vm1082 = vweird.f32 %v1060
    %vm1083 = vweird.f32 %v1077
    %vm1084 = vmor %vm1082, %vm1083
    %v1085 = vsel %vm1084, %v1077, %v1081
    %v1086 = vand.u32 2147483647, %v1060
    %vm1087 = vcmp.eq.f32.partialorder %v1086, 8.507059e+37
    %v1088 = vand.u32 %v1060, 2147483648
    %v1089 = vor.u32 1.1754944e-38, %v1088
    %v1090 = vsel %vm1087, %v1089, %v1085
    %v1091 = vmul.f32 1.0, %v1090
    %v1092 = vrcp.pop %v1061
    %v1093 = vmul.f32 %v1061, %v1092
    %v1094 = vsub.f32 1.0, %v1093
    %v1095 = vmul.f32 %v1092, %v1094
    %v1096 = vadd.f32 %v1092, %v1095
    %vm1097 = vweird.f32 %v1061
    %vm1098 = vweird.f32 %v1092
    %vm1099 = vmor %vm1097, %vm1098
    %v1100 = vsel %vm1099, %v1092, %v1096
    %v1101 = vand.u32 2147483647, %v1061
    %vm1102 = vcmp.eq.f32.partialorder %v1101, 8.507059e+37
    %v1103 = vand.u32 %v1061, 2147483648
    %v1104 = vor.u32 1.1754944e-38, %v1103
    %v1105 = vsel %vm1102, %v1104, %v1100
    %v1106 = vmul.f32 1.0, %v1105
    %v1107 = vtanh.pop %v1049
    %v1108 = vmul.f32 %v1091, %v985
    %v1109 = vmul.f32 %v1076, %v1107
    %v1110 = vadd.f32 %v1108, %v1109
    %v1111 = vtanh.pop %v1110
    %v1112 = vmul.f32 %v1106, %v1111
    %1113 = vst [vmem:[#allocation8 + $0x20] sm:$0xff] %v1112
    %v1114 = vld [vmem:[#allocation2 + $0xa0] sm:$0xff]
    %v1115 = vld [vmem:[#allocation2 + $0xa8] sm:$0xff]
    %v1116 = vld [vmem:[#allocation2 + $0xb0] sm:$0xff]
    %v1117 = vld [vmem:[#allocation2 + $0xb8] sm:$0xff]
    %v1118 = vpack.c.bf16 %v1112, %v1112
    %1119 = vmatpush.bf16.msra.mxu0 %v458
    %1120 = vmatpush.bf16.msra.mxu0 %v454
    %1121 = vmatpush.bf16.msra.mxu0 %v450
    %1122 = vmatpush.bf16.msra.mxu0 %v446
    %1123 = vmatpush.bf16.msra.mxu0 %v442
    %1124 = vmatpush.bf16.msra.mxu0 %v438
    %1125 = vmatpush.bf16.msra.mxu0 %v434
    %1126 = vmatpush.bf16.msra.mxu0 %v430
    %1127 = vmatmul.bf16.gmra.mxu0 %v1118
    %v1128 = vpop.f32.mrf.mxu0
    %v1129 = vadd.f32 0.0, %v1128
    %v1130 = vpop.f32.mrf.mxu0
    %1131 = vdwg.mxu0
    %1132 = vmatpush.bf16.msra.mxu0 %v459
    %1133 = vmatpush.bf16.msra.mxu0 %v455
    %1134 = vmatpush.bf16.msra.mxu0 %v451
    %1135 = vmatpush.bf16.msra.mxu0 %v447
    %1136 = vmatpush.bf16.msra.mxu0 %v443
    %1137 = vmatpush.bf16.msra.mxu0 %v439
    %1138 = vmatpush.bf16.msra.mxu0 %v435
    %1139 = vmatpush.bf16.msra.mxu0 %v431
    %1140 = vmatmul.bf16.gmra.mxu0 %v1118
    %v1141 = vpop.f32.mrf.mxu0
    %v1142 = vadd.f32 0.0, %v1141
    %v1143 = vpop.f32.mrf.mxu0
    %1144 = vdwg.mxu0
    %1145 = vmatpush.bf16.msra.mxu0 %v460
    %1146 = vmatpush.bf16.msra.mxu0 %v456
    %1147 = vmatpush.bf16.msra.mxu0 %v452
    %1148 = vmatpush.bf16.msra.mxu0 %v448
    %1149 = vmatpush.bf16.msra.mxu0 %v444
    %1150 = vmatpush.bf16.msra.mxu0 %v440
    %1151 = vmatpush.bf16.msra.mxu0 %v436
    %1152 = vmatpush.bf16.msra.mxu0 %v432
    %1153 = vmatmul.bf16.gmra.mxu0 %v1118
    %v1154 = vpop.f32.mrf.mxu0
    %v1155 = vadd.f32 0.0, %v1154
    %v1156 = vpop.f32.mrf.mxu0
    %1157 = vdwg.mxu0
    %1158 = vmatpush.bf16.msra.mxu0 %v461
    %1159 = vmatpush.bf16.msra.mxu0 %v457
    %1160 = vmatpush.bf16.msra.mxu0 %v453
    %1161 = vmatpush.bf16.msra.mxu0 %v449
    %1162 = vmatpush.bf16.msra.mxu0 %v445
    %1163 = vmatpush.bf16.msra.mxu0 %v441
    %1164 = vmatpush.bf16.msra.mxu0 %v437
    %1165 = vmatpush.bf16.msra.mxu0 %v433
    %1166 = vmatmul.bf16.gmra.mxu0 %v1118
    %v1167 = vpop.f32.mrf.mxu0
    %v1168 = vadd.f32 0.0, %v1167
    %v1169 = vpop.f32.mrf.mxu0
    %1170 = vdwg.mxu0
    %v1171 = vadd.f32 %v1114, %v1129
    %v1172 = vadd.f32 %v1115, %v1142
    %v1173 = vadd.f32 %v1116, %v1155
    %v1174 = vadd.f32 %v1117, %v1168
    %v1175 = vxor.u32 %v1171, 2147483648
    %v1176 = vxor.u32 %v1172, 2147483648
    %v1177 = vxor.u32 %v1173, 2147483648
    %v1178 = vmul.f32 %v1175, 1.442695
    %v1179 = vpow.pop %v1178
    %v1180 = vmul.f32 %v1176, 1.442695
    %v1181 = vpow.pop %v1180
    %v1182 = vmul.f32 %v1177, 1.442695
    %v1183 = vpow.pop %v1182
    %v1184 = vadd.f32 %v1179, 1.0
    %v1185 = vadd.f32 %v1181, 1.0
    %v1186 = vadd.f32 %v1183, 1.0
    %v1187 = vrcp.pop %v1184
    %v1188 = vmul.f32 %v1184, %v1187
    %v1189 = vsub.f32 1.0, %v1188
    %v1190 = vmul.f32 %v1187, %v1189
    %v1191 = vadd.f32 %v1187, %v1190
    %vm1192 = vweird.f32 %v1184
    %vm1193 = vweird.f32 %v1187
    %vm1194 = vmor %vm1192, %vm1193
    %v1195 = vsel %vm1194, %v1187, %v1191
    %v1196 = vand.u32 2147483647, %v1184
    %vm1197 = vcmp.eq.f32.partialorder %v1196, 8.507059e+37
    %v1198 = vand.u32 %v1184, 2147483648
    %v1199 = vor.u32 1.1754944e-38, %v1198
    %v1200 = vsel %vm1197, %v1199, %v1195
    %v1201 = vmul.f32 1.0, %v1200
    %v1202 = vrcp.pop %v1185
    %v1203 = vmul.f32 %v1185, %v1202
    %v1204 = vsub.f32 1.0, %v1203
    %v1205 = vmul.f32 %v1202, %v1204
    %v1206 = vadd.f32 %v1202, %v1205
    %vm1207 = vweird.f32 %v1185
    %vm1208 = vweird.f32 %v1202
    %vm1209 = vmor %vm1207, %vm1208
    %v1210 = vsel %vm1209, %v1202, %v1206
    %v1211 = vand.u32 2147483647, %v1185
    %vm1212 = vcmp.eq.f32.partialorder %v1211, 8.507059e+37
    %v1213 = vand.u32 %v1185, 2147483648
    %v1214 = vor.u32 1.1754944e-38, %v1213
    %v1215 = vsel %vm1212, %v1214, %v1210
    %v1216 = vmul.f32 1.0, %v1215
    %v1217 = vrcp.pop %v1186
    %v1218 = vmul.f32 %v1186, %v1217
    %v1219 = vsub.f32 1.0, %v1218
    %v1220 = vmul.f32 %v1217, %v1219
    %v1221 = vadd.f32 %v1217, %v1220
    %vm1222 = vweird.f32 %v1186
    %vm1223 = vweird.f32 %v1217
    %vm1224 = vmor %vm1222, %vm1223
    %v1225 = vsel %vm1224, %v1217, %v1221
    %v1226 = vand.u32 2147483647, %v1186
    %vm1227 = vcmp.eq.f32.partialorder %v1226, 8.507059e+37
    %v1228 = vand.u32 %v1186, 2147483648
    %v1229 = vor.u32 1.1754944e-38, %v1228
    %v1230 = vsel %vm1227, %v1229, %v1225
    %v1231 = vmul.f32 1.0, %v1230
    %v1232 = vtanh.pop %v1174
    %v1233 = vmul.f32 %v1216, %v1110
    %v1234 = vmul.f32 %v1201, %v1232
    %v1235 = vadd.f32 %v1233, %v1234
    %v1236 = vtanh.pop %v1235
    %v1237 = vmul.f32 %v1231, %v1236
    %1238 = vst [vmem:[#allocation8 + $0x28] sm:$0xff] %v1237
    %v1239 = vld [vmem:[#allocation2 + $0xc0] sm:$0xff]
    %v1240 = vld [vmem:[#allocation2 + $0xc8] sm:$0xff]
    %v1241 = vld [vmem:[#allocation2 + $0xd0] sm:$0xff]
    %v1242 = vld [vmem:[#allocation2 + $0xd8] sm:$0xff]
    %v1243 = vpack.c.bf16 %v1237, %v1237
    %1244 = vmatpush.bf16.msra.mxu0 %v458
    %1245 = vmatpush.bf16.msra.mxu0 %v454
    %1246 = vmatpush.bf16.msra.mxu0 %v450
    %1247 = vmatpush.bf16.msra.mxu0 %v446
    %1248 = vmatpush.bf16.msra.mxu0 %v442
    %1249 = vmatpush.bf16.msra.mxu0 %v438
    %1250 = vmatpush.bf16.msra.mxu0 %v434
    %1251 = vmatpush.bf16.msra.mxu0 %v430
    %1252 = vmatmul.bf16.gmra.mxu0 %v1243
    %v1253 = vpop.f32.mrf.mxu0
    %v1254 = vadd.f32 0.0, %v1253
    %v1255 = vpop.f32.mrf.mxu0
    %1256 = vdwg.mxu0
    %1257 = vmatpush.bf16.msra.mxu0 %v459
    %1258 = vmatpush.bf16.msra.mxu0 %v455
    %1259 = vmatpush.bf16.msra.mxu0 %v451
    %1260 = vmatpush.bf16.msra.mxu0 %v447
    %1261 = vmatpush.bf16.msra.mxu0 %v443
    %1262 = vmatpush.bf16.msra.mxu0 %v439
    %1263 = vmatpush.bf16.msra.mxu0 %v435
    %1264 = vmatpush.bf16.msra.mxu0 %v431
    %1265 = vmatmul.bf16.gmra.mxu0 %v1243
    %v1266 = vpop.f32.mrf.mxu0
    %v1267 = vadd.f32 0.0, %v1266
    %v1268 = vpop.f32.mrf.mxu0
    %1269 = vdwg.mxu0
    %1270 = vmatpush.bf16.msra.mxu0 %v460
    %1271 = vmatpush.bf16.msra.mxu0 %v456
    %1272 = vmatpush.bf16.msra.mxu0 %v452
    %1273 = vmatpush.bf16.msra.mxu0 %v448
    %1274 = vmatpush.bf16.msra.mxu0 %v444
    %1275 = vmatpush.bf16.msra.mxu0 %v440
    %1276 = vmatpush.bf16.msra.mxu0 %v436
    %1277 = vmatpush.bf16.msra.mxu0 %v432
    %1278 = vmatmul.bf16.gmra.mxu0 %v1243
    %v1279 = vpop.f32.mrf.mxu0
    %v1280 = vadd.f32 0.0, %v1279
    %v1281 = vpop.f32.mrf.mxu0
    %1282 = vdwg.mxu0
    %1283 = vmatpush.bf16.msra.mxu0 %v461
    %1284 = vmatpush.bf16.msra.mxu0 %v457
    %1285 = vmatpush.bf16.msra.mxu0 %v453
    %1286 = vmatpush.bf16.msra.mxu0 %v449
    %1287 = vmatpush.bf16.msra.mxu0 %v445
    %1288 = vmatpush.bf16.msra.mxu0 %v441
    %1289 = vmatpush.bf16.msra.mxu0 %v437
    %1290 = vmatpush.bf16.msra.mxu0 %v433
    %1291 = vmatmul.bf16.gmra.mxu0 %v1243
    %v1292 = vpop.f32.mrf.mxu0
    %v1293 = vadd.f32 0.0, %v1292
    %v1294 = vpop.f32.mrf.mxu0
    %1295 = vdwg.mxu0
    %v1296 = vadd.f32 %v1239, %v1254
    %v1297 = vadd.f32 %v1240, %v1267
    %v1298 = vadd.f32 %v1241, %v1280
    %v1299 = vadd.f32 %v1242, %v1293
    %v1300 = vxor.u32 %v1296, 2147483648
    %v1301 = vxor.u32 %v1297, 2147483648
    %v1302 = vxor.u32 %v1298, 2147483648
    %v1303 = vmul.f32 %v1300, 1.442695
    %v1304 = vpow.pop %v1303
    %v1305 = vmul.f32 %v1301, 1.442695
    %v1306 = vpow.pop %v1305
    %v1307 = vmul.f32 %v1302, 1.442695
    %v1308 = vpow.pop %v1307
    %v1309 = vadd.f32 %v1304, 1.0
    %v1310 = vadd.f32 %v1306, 1.0
    %v1311 = vadd.f32 %v1308, 1.0
    %v1312 = vrcp.pop %v1309
    %v1313 = vmul.f32 %v1309, %v1312
    %v1314 = vsub.f32 1.0, %v1313
    %v1315 = vmul.f32 %v1312, %v1314
    %v1316 = vadd.f32 %v1312, %v1315
    %vm1317 = vweird.f32 %v1309
    %vm1318 = vweird.f32 %v1312
    %vm1319 = vmor %vm1317, %vm1318
    %v1320 = vsel %vm1319, %v1312, %v1316
    %v1321 = vand.u32 2147483647, %v1309
    %vm1322 = vcmp.eq.f32.partialorder %v1321, 8.507059e+37
    %v1323 = vand.u32 %v1309, 2147483648
    %v1324 = vor.u32 1.1754944e-38, %v1323
    %v1325 = vsel %vm1322, %v1324, %v1320
    %v1326 = vmul.f32 1.0, %v1325
    %v1327 = vrcp.pop %v1310
    %v1328 = vmul.f32 %v1310, %v1327
    %v1329 = vsub.f32 1.0, %v1328
    %v1330 = vmul.f32 %v1327, %v1329
    %v1331 = vadd.f32 %v1327, %v1330
    %vm1332 = vweird.f32 %v1310
    %vm1333 = vweird.f32 %v1327
    %vm1334 = vmor %vm1332, %vm1333
    %v1335 = vsel %vm1334, %v1327, %v1331
    %v1336 = vand.u32 2147483647, %v1310
    %vm1337 = vcmp.eq.f32.partialorder %v1336, 8.507059e+37
    %v1338 = vand.u32 %v1310, 2147483648
    %v1339 = vor.u32 1.1754944e-38, %v1338
    %v1340 = vsel %vm1337, %v1339, %v1335
    %v1341 = vmul.f32 1.0, %v1340
    %v1342 = vrcp.pop %v1311
    %v1343 = vmul.f32 %v1311, %v1342
    %v1344 = vsub.f32 1.0, %v1343
    %v1345 = vmul.f32 %v1342, %v1344
    %v1346 = vadd.f32 %v1342, %v1345
    %vm1347 = vweird.f32 %v1311
    %vm1348 = vweird.f32 %v1342
    %vm1349 = vmor %vm1347, %vm1348
    %v1350 = vsel %vm1349, %v1342, %v1346
    %v1351 = vand.u32 2147483647, %v1311
    %vm1352 = vcmp.eq.f32.partialorder %v1351, 8.507059e+37
    %v1353 = vand.u32 %v1311, 2147483648
    %v1354 = vor.u32 1.1754944e-38, %v1353
    %v1355 = vsel %vm1352, %v1354, %v1350
    %v1356 = vmul.f32 1.0, %v1355
    %v1357 = vtanh.pop %v1299
    %v1358 = vmul.f32 %v1341, %v1235
    %v1359 = vmul.f32 %v1326, %v1357
    %v1360 = vadd.f32 %v1358, %v1359
    %v1361 = vtanh.pop %v1360
    %v1362 = vmul.f32 %v1356, %v1361
    %1363 = vst [vmem:[#allocation8 + $0x30] sm:$0xff] %v1362
    %v1364 = vld [vmem:[#allocation2 + $0xe0] sm:$0xff]
    %v1365 = vld [vmem:[#allocation2 + $0xe8] sm:$0xff]
    %v1366 = vld [vmem:[#allocation2 + $0xf0] sm:$0xff]
    %v1367 = vld [vmem:[#allocation2 + $0xf8] sm:$0xff]
    %v1368 = vpack.c.bf16 %v1362, %v1362
    %1369 = vmatpush.bf16.msra.mxu0 %v458
    %1370 = vmatpush.bf16.msra.mxu0 %v454
    %1371 = vmatpush.bf16.msra.mxu0 %v450
    %1372 = vmatpush.bf16.msra.mxu0 %v446
    %1373 = vmatpush.bf16.msra.mxu0 %v442
    %1374 = vmatpush.bf16.msra.mxu0 %v438
    %1375 = vmatpush.bf16.msra.mxu0 %v434
    %1376 = vmatpush.bf16.msra.mxu0 %v430
    %1377 = vmatmul.bf16.gmra.mxu0 %v1368
    %v1378 = vpop.f32.mrf.mxu0
    %v1379 = vadd.f32 0.0, %v1378
    %v1380 = vpop.f32.mrf.mxu0
    %1381 = vdwg.mxu0
    %1382 = vmatpush.bf16.msra.mxu0 %v459
    %1383 = vmatpush.bf16.msra.mxu0 %v455
    %1384 = vmatpush.bf16.msra.mxu0 %v451
    %1385 = vmatpush.bf16.msra.mxu0 %v447
    %1386 = vmatpush.bf16.msra.mxu0 %v443
    %1387 = vmatpush.bf16.msra.mxu0 %v439
    %1388 = vmatpush.bf16.msra.mxu0 %v435
    %1389 = vmatpush.bf16.msra.mxu0 %v431
    %1390 = vmatmul.bf16.gmra.mxu0 %v1368
    %v1391 = vpop.f32.mrf.mxu0
    %v1392 = vadd.f32 0.0, %v1391
    %v1393 = vpop.f32.mrf.mxu0
    %1394 = vdwg.mxu0
    %1395 = vmatpush.bf16.msra.mxu0 %v460
    %1396 = vmatpush.bf16.msra.mxu0 %v456
    %1397 = vmatpush.bf16.msra.mxu0 %v452
    %1398 = vmatpush.bf16.msra.mxu0 %v448
    %1399 = vmatpush.bf16.msra.mxu0 %v444
    %1400 = vmatpush.bf16.msra.mxu0 %v440
    %1401 = vmatpush.bf16.msra.mxu0 %v436
    %1402 = vmatpush.bf16.msra.mxu0 %v432
    %1403 = vmatmul.bf16.gmra.mxu0 %v1368
    %v1404 = vpop.f32.mrf.mxu0
    %v1405 = vadd.f32 0.0, %v1404
    %v1406 = vpop.f32.mrf.mxu0
    %1407 = vdwg.mxu0
    %1408 = vmatpush.bf16.msra.mxu0 %v461
    %1409 = vmatpush.bf16.msra.mxu0 %v457
    %1410 = vmatpush.bf16.msra.mxu0 %v453
    %1411 = vmatpush.bf16.msra.mxu0 %v449
    %1412 = vmatpush.bf16.msra.mxu0 %v445
    %1413 = vmatpush.bf16.msra.mxu0 %v441
    %1414 = vmatpush.bf16.msra.mxu0 %v437
    %1415 = vmatpush.bf16.msra.mxu0 %v433
    %1416 = vmatmul.bf16.gmra.mxu0 %v1368
    %v1417 = vpop.f32.mrf.mxu0
    %v1418 = vadd.f32 0.0, %v1417
    %v1419 = vpop.f32.mrf.mxu0
    %1420 = vdwg.mxu0
    %v1421 = vadd.f32 %v1364, %v1379
    %v1422 = vadd.f32 %v1365, %v1392
    %v1423 = vadd.f32 %v1366, %v1405
    %v1424 = vadd.f32 %v1367, %v1418
    %v1425 = vxor.u32 %v1421, 2147483648
    %v1426 = vxor.u32 %v1422, 2147483648
    %v1427 = vxor.u32 %v1423, 2147483648
    %v1428 = vmul.f32 %v1425, 1.442695
    %v1429 = vpow.pop %v1428
    %v1430 = vmul.f32 %v1426, 1.442695
    %v1431 = vpow.pop %v1430
    %v1432 = vmul.f32 %v1427, 1.442695
    %v1433 = vpow.pop %v1432
    %v1434 = vadd.f32 %v1429, 1.0
    %v1435 = vadd.f32 %v1431, 1.0
    %v1436 = vadd.f32 %v1433, 1.0
    %v1437 = vrcp.pop %v1434
    %v1438 = vmul.f32 %v1434, %v1437
    %v1439 = vsub.f32 1.0, %v1438
    %v1440 = vmul.f32 %v1437, %v1439
    %v1441 = vadd.f32 %v1437, %v1440
    %vm1442 = vweird.f32 %v1434
    %vm1443 = vweird.f32 %v1437
    %vm1444 = vmor %vm1442, %vm1443
    %v1445 = vsel %vm1444, %v1437, %v1441
    %v1446 = vand.u32 2147483647, %v1434
    %vm1447 = vcmp.eq.f32.partialorder %v1446, 8.507059e+37
    %v1448 = vand.u32 %v1434, 2147483648
    %v1449 = vor.u32 1.1754944e-38, %v1448
    %v1450 = vsel %vm1447, %v1449, %v1445
    %v1451 = vmul.f32 1.0, %v1450
    %v1452 = vrcp.pop %v1435
    %v1453 = vmul.f32 %v1435, %v1452
    %v1454 = vsub.f32 1.0, %v1453
    %v1455 = vmul.f32 %v1452, %v1454
    %v1456 = vadd.f32 %v1452, %v1455
    %vm1457 = vweird.f32 %v1435
    %vm1458 = vweird.f32 %v1452
    %vm1459 = vmor %vm1457, %vm1458
    %v1460 = vsel %vm1459, %v1452, %v1456
    %v1461 = vand.u32 2147483647, %v1435
    %vm1462 = vcmp.eq.f32.partialorder %v1461, 8.507059e+37
    %v1463 = vand.u32 %v1435, 2147483648
    %v1464 = vor.u32 1.1754944e-38, %v1463
    %v1465 = vsel %vm1462, %v1464, %v1460
    %v1466 = vmul.f32 1.0, %v1465
    %v1467 = vrcp.pop %v1436
    %v1468 = vmul.f32 %v1436, %v1467
    %v1469 = vsub.f32 1.0, %v1468
    %v1470 = vmul.f32 %v1467, %v1469
    %v1471 = vadd.f32 %v1467, %v1470
    %vm1472 = vweird.f32 %v1436
    %vm1473 = vweird.f32 %v1467
    %vm1474 = vmor %vm1472, %vm1473
    %v1475 = vsel %vm1474, %v1467, %v1471
    %v1476 = vand.u32 2147483647, %v1436
    %vm1477 = vcmp.eq.f32.partialorder %v1476, 8.507059e+37
    %v1478 = vand.u32 %v1436, 2147483648
    %v1479 = vor.u32 1.1754944e-38, %v1478
    %v1480 = vsel %vm1477, %v1479, %v1475
    %v1481 = vmul.f32 1.0, %v1480
    %v1482 = vtanh.pop %v1424
    %v1483 = vmul.f32 %v1466, %v1360
    %v1484 = vmul.f32 %v1451, %v1482
    %v1485 = vadd.f32 %v1483, %v1484
    %v1486 = vtanh.pop %v1485
    %v1487 = vmul.f32 %v1481, %v1486
    %1488 = vst [vmem:[#allocation8 + $0x38] sm:$0xff] %v1487
    // Predicated region
    $region26: #{tpu_custom_call.1} parent=1 // pred_check
      _
    $region27: #{tpu_custom_call.1} parent=1 // pred_check_branch
      %1490 = sbr.rel (0) target = $region29
    $region28: #{tpu_custom_call.1} parent=1 // pred_region
      %1492 = vsyncadd [#allocation5], 0
      %s1493 = sshll.u32 [#allocation8], 4
      %s1494 = int_to_ptr.vmem [resolvable:$true] %s1493
      %s1495 = sshll.u32 %s4, 4
      %s1496 = int_to_ptr.hbm [resolvable:$true] %s1495
      %1501 = dma.vmem_to_hbm [thread:$0]  %s1494, 1024, %s1496, [#allocation5], 128, 128, 8
    $region29: #{tpu_custom_call.1} parent=1 // pred_fallthru
      _
    // Predicated region
    $region30: #{tpu_custom_call.1} parent=1 // pred_check
      _
    $region31: #{tpu_custom_call.1} parent=1 // pred_check_branch
      %1503 = sbr.rel (0) target = $region33
    $region32: #{tpu_custom_call.1} parent=1 // pred_region
      %1505 = dma.done [#allocation5], 1024
    $region33: #{tpu_custom_call.1} parent=1 // pred_fallthru
      _
    %1506 = vsyncpa [#allocation4], 1
    %1507 = vsyncpa [#allocation7], 1
    %1508 = vsyncpa [#allocation5], 1

</llo_original>
